<compile_context>
chip_gen: v6e
topology: v6e:2x2x1
jax: 0.10.0
libtpu: 0.0.40
codegen_flags: <defaults>
</compile_context>

<pallas_src>
import functools

import jax
import jax.numpy as jnp
import numpy as np
from jax.experimental import pallas as pl
from jax.experimental.pallas import tpu as pltpu


def _round_up(x, m):
    return ((x + m - 1) // m) * m


# ---------------------------------------------------------------------------
# Stage 1: conv stack; pointfeat written straight into the dense output;
#          running global max over point tiles.
# ---------------------------------------------------------------------------
def _feat_kernel(x_ref, w1_ref, b1_ref, w2_ref, b2_ref, w3_ref, b3_ref,
                 pf_ref, g_ref, acc_ref, *, n_valid, tn):
    t = pl.program_id(1)                                       # point-tile index
    last = pl.num_programs(1) - 1

    x = x_ref[0]                                               # (C0, TN)

    # conv1 (1x1, BN scale folded into W) + shift + ReLU -> pointfeat rows of dense
    h1 = jnp.dot(w1_ref[...], x, preferred_element_type=jnp.float32)
    h1 = jnp.maximum(h1 + b1_ref[...], 0.0)                    # (C1, TN)
    pf_ref[0] = h1                                             # dense[:, C3:, tile]

    # conv2 + shift + ReLU
    h2 = jnp.dot(w2_ref[...], h1, preferred_element_type=jnp.float32)
    h2 = jnp.maximum(h2 + b2_ref[...], 0.0)                    # (C2, TN)

    # conv3 + shift (no ReLU)
    h3 = jnp.dot(w3_ref[...], h2, preferred_element_type=jnp.float32)
    h3 = h3 + b3_ref[...]                                      # (C3, TN)

    @pl.when(t == 0)
    def _():
        acc_ref[...] = jnp.full(acc_ref.shape, -jnp.inf, acc_ref.dtype)

    if n_valid % tn != 0:
        # Only the last tile has padded lanes -> pay for the mask only there.
        @pl.when(t != last)
        def _():
            acc_ref[...] = jnp.maximum(
                acc_ref[...], jnp.max(h3, axis=1, keepdims=True))

        @pl.when(t == last)
        def _():
            lane = jax.lax.broadcasted_iota(jnp.int32, h3.shape, 1)
            h3m = jnp.where(t * tn + lane < n_valid, h3, -jnp.inf)
            acc_ref[...] = jnp.maximum(
                acc_ref[...], jnp.max(h3m, axis=1, keepdims=True))
    else:
        acc_ref[...] = jnp.maximum(
            acc_ref[...], jnp.max(h3, axis=1, keepdims=True))

    @pl.when(t == last)
    def _():
        g_ref[0] = acc_ref[...]                                # (C3, 1), no transpose


# ---------------------------------------------------------------------------
# Stage 2: broadcast the completed global feature into dense[:, :C3, :].
# The dense buffer (already holding pointfeat in rows C3:) is aliased in/out,
# so the pointfeat rows are preserved without being re-read or re-written.
# ---------------------------------------------------------------------------
def _broadcast_kernel(g_ref, dense_in_ref, out_ref):
    del dense_in_ref                                           # alias only; never read
    c3 = out_ref.shape[1]
    tn = out_ref.shape[2]
    out_ref[0] = jnp.broadcast_to(g_ref[0], (c3, tn))          # (C3, TN), lane-dense


@functools.partial(jax.jit, static_argnames=("tn",))
def _forward(x, params, *, tn):
    B, C0, N = x.shape
    C1 = params["w1"].shape[0]
    C2 = params["w2"].shape[0]
    C3 = params["w3"].shape[0]
    assert C3 % C1 == 0, "pointfeat-into-dense fusion requires C1 | C3"

    n_tiles = pl.cdiv(N, tn)
    full2d = lambda b, t: (0, 0)
    dense_shape = jax.ShapeDtypeStruct((B, C3 + C1, N), jnp.float32)

    dense_partial, g3 = pl.pallas_call(
        functools.partial(_feat_kernel, n_valid=N, tn=tn),
        out_shape=(
            dense_shape,                                        # pointfeat rows written here
            jax.ShapeDtypeStruct((B, C3, 1), jnp.float32),      # global feature (column)
        ),
        grid_spec=pltpu.PrefetchScalarGridSpec(
            num_scalar_prefetch=0,
            grid=(B, n_tiles),
            in_specs=[
                pl.BlockSpec((1, C0, tn), lambda b, t: (b, 0, t)),
                pl.BlockSpec((C1, C0), full2d), pl.BlockSpec((C1, 1), full2d),
                pl.BlockSpec((C2, C1), full2d), pl.BlockSpec((C2, 1), full2d),
                pl.BlockSpec((C3, C2), full2d), pl.BlockSpec((C3, 1), full2d),
            ],
            out_specs=(
                # Lower channel block of dense = pointfeat (rows C3 .. C3+C1-1).
                pl.BlockSpec((1, C1, tn), lambda b, t: (b, C3 // C1, t)),
                # Global feature: resident over t (reduction axis).
                pl.BlockSpec((1, C3, 1), lambda b, t: (b, 0, 0)),
            ),
            scratch_shapes=[pltpu.VMEM((C3, 1), jnp.float32)],   # running max
        ),
        compiler_params=pltpu.CompilerParams(
            dimension_semantics=("parallel", "arbitrary"),
        ),
    )(x, params["w1"], params["b1"], params["w2"], params["b2"],
      params["w3"], params["b3"])

    dense = pl.pallas_call(
        _broadcast_kernel,
        out_shape=dense_shape,
        grid_spec=pltpu.PrefetchScalarGridSpec(
            num_scalar_prefetch=0,
            grid=(B, n_tiles),
            in_specs=[
                pl.BlockSpec((1, C3, 1), lambda b, t: (b, 0, 0)),
                pl.BlockSpec(memory_space=pl.ANY),               # aliased dense buffer
            ],
            out_specs=pl.BlockSpec((1, C3, tn), lambda b, t: (b, 0, t)),
        ),
        input_output_aliases={1: 0},
        compiler_params=pltpu.CompilerParams(
            dimension_semantics=("parallel", "parallel"),
        ),
        cost_estimate=pl.CostEstimate(
            flops=0, transcendentals=0,
            bytes_accessed=int(B * C3 * N * 4 + B * C3 * 4)),
    )(g3, dense_partial)

    global_feat = jnp.squeeze(g3, axis=-1)                       # (B, C3)
    return dense, global_feat


def mini_pointnet_feat(x, params, *, tn=None):
    """x: (B, C0, N) float32. Returns (dense (B, C3+C1, N), global_feat (B, C3))."""
    _, _, N = x.shape
    if tn is None:
        # Large lane-dense tile (multiple of 512): fewer grid steps, better HBM
        # roofline; VMEM stays tiny even at 2048 (fits v7x's 64 MiB budget).
        tn = min(2048, _round_up(N, 512))
    tn = _round_up(tn, 128)
    return _forward(x, params, tn=tn)


def init_params(key, nn_channels=(3, 64, 128, 256), eps=1e-5):
    """Deterministic synthetic conv + BN params, BN fully folded into (w, b)."""
    C0, C1, C2, C3 = nn_channels
    keys = jax.random.split(key, 9)
    params = {}
    for idx, (cin, cout) in enumerate(((C0, C1), (C1, C2), (C2, C3)), start=1):
        kw, kb, kg = keys[3 * (idx - 1): 3 * idx]
        w = jax.random.normal(kw, (cout, cin), jnp.float32) * 0.2        # Conv1d weight (k=1)
        conv_b = jax.random.normal(kb, (cout,), jnp.float32) * 0.1       # Conv1d bias
        gamma = 1.0 + 0.1 * jax.random.normal(kg, (cout,), jnp.float32)  # BN weight
        beta = 0.05 * jnp.arange(cout, dtype=jnp.float32) / cout         # BN bias
        r_mean = 0.01 * jnp.arange(cout, dtype=jnp.float32)              # BN running_mean
        r_var = 1.0 + 0.02 * jnp.arange(cout, dtype=jnp.float32)         # BN running_var
        scale = gamma / jnp.sqrt(r_var + eps)
        shift = beta + scale * (conv_b - r_mean)
        params[f"w{idx}"] = w * scale[:, None]        # BN scale folded into conv weight
        params[f"b{idx}"] = shift.reshape(cout, 1)    # remaining per-channel shift
    return params


def _reference(x, p):
    """Pure-JAX reference of the same (BN-folded) forward pass."""
    h1 = jnp.maximum(jnp.einsum("oc,bcn->bon", p["w1"], x) + p["b1"], 0.0)
    h2 = jnp.maximum(jnp.einsum("oc,bcn->bon", p["w2"], h1) + p["b2"], 0.0)
    h3 = jnp.einsum("oc,bcn->bon", p["w3"], h2) + p["b3"]
    g = jnp.max(h3, axis=2)                                   # (B, C3)
    dense = jnp.concatenate(
        [jnp.broadcast_to(g[:, :, None], h3.shape), h1], axis=1)
    return dense, g


if __name__ == "__main__":
    B, N = 2, 200                      # N not a multiple of the tile: exercises edge masking
    nn_channels = (3, 64, 128, 256)    # module defaults

    key = jax.random.PRNGKey(0)
    kx, kp = jax.random.split(key)
    x = jax.random.normal(kx, (B, nn_channels[0], N), jnp.float32)
    params = init_params(kp, nn_channels)

    ref_dense, ref_g = _reference(x, params)

    # Multi-tile path (2 point tiles, ragged masked edge).
    dense, global_feat = mini_pointnet_feat(x, params, tn=128)
    jax.block_until_ready((dense, global_feat))
    np.testing.assert_allclose(np.asarray(dense), np.asarray(ref_dense),
                               rtol=1e-4, atol=1e-4)
    np.testing.assert_allclose(np.asarray(global_feat), np.asarray(ref_g),
                               rtol=1e-4, atol=1e-4)

    # Default (large lane-dense) tile path: single ragged tile.
    dense2, g2 = mini_pointnet_feat(x, params)
    jax.block_until_ready((dense2, g2))
    np.testing.assert_allclose(np.asarray(dense2), np.asarray(ref_dense),
                               rtol=1e-4, atol=1e-4)
    np.testing.assert_allclose(np.asarray(g2), np.asarray(ref_g),
                               rtol=1e-4, atol=1e-4)

    assert dense.shape == (B, nn_channels[-1] + nn_channels[1], N)
    assert global_feat.shape == (B, nn_channels[-1])
    print("KERNEL_OK")
</pallas_src>

<mosaic_0001>
module attributes {stable_mosaic.version = 11 : i64} {
  func.func @_feat_kernel(%arg0: i32, %arg1: i32, %arg2: memref<1x3x128xf32, #tpu.memory_space<vmem>>, %arg3: memref<64x3xf32, #tpu.memory_space<vmem>>, %arg4: memref<64x1xf32, #tpu.memory_space<vmem>>, %arg5: memref<128x64xf32, #tpu.memory_space<vmem>>, %arg6: memref<128x1xf32, #tpu.memory_space<vmem>>, %arg7: memref<256x128xf32, #tpu.memory_space<vmem>>, %arg8: memref<256x1xf32, #tpu.memory_space<vmem>>, %arg9: memref<1x64x128xf32, #tpu.memory_space<vmem>>, %arg10: memref<1x256x1xf32, #tpu.memory_space<vmem>>, %arg11: memref<256x1xf32, #tpu.memory_space<vmem>>) attributes {dimension_semantics = [#tpu.dimension_semantics<parallel>, #tpu.dimension_semantics<arbitrary>], iteration_bounds = array<i64: 2, 2>, scalar_prefetch = 0 : i64, scratch_operands = 1 : i64, tpu.core_type = #tpu.core_type<tc>, window_params = [{transform_indices = @transform_0, window_bounds = array<i64: 1, 3, 128>}, {pipeline_mode = #tpu.pipeline_mode<synchronous>, transform_indices = @transform_1, window_bounds = array<i64: 64, 3>}, {pipeline_mode = #tpu.pipeline_mode<synchronous>, transform_indices = @transform_2, window_bounds = array<i64: 64, 1>}, {pipeline_mode = #tpu.pipeline_mode<synchronous>, transform_indices = @transform_3, window_bounds = array<i64: 128, 64>}, {pipeline_mode = #tpu.pipeline_mode<synchronous>, transform_indices = @transform_4, window_bounds = array<i64: 128, 1>}, {pipeline_mode = #tpu.pipeline_mode<synchronous>, transform_indices = @transform_5, window_bounds = array<i64: 256, 128>}, {pipeline_mode = #tpu.pipeline_mode<synchronous>, transform_indices = @transform_6, window_bounds = array<i64: 256, 1>}, {transform_indices = @transform_7, window_bounds = array<i64: 1, 64, 128>}, {transform_indices = @transform_8, window_bounds = array<i64: 1, 256, 1>}]} {
    %c0 = arith.constant 0 : index
    %c0_0 = arith.constant 0 : index
    %c0_1 = arith.constant 0 : index
    %0 = vector.load %arg2[%c0, %c0_0, %c0_1] : memref<1x3x128xf32, #tpu.memory_space<vmem>>, vector<1x3x128xf32>
    %1 = vector.shape_cast %0 : vector<1x3x128xf32> to vector<3x128xf32>
    %c0_2 = arith.constant 0 : index
    %c0_3 = arith.constant 0 : index
    %2 = vector.load %arg3[%c0_2, %c0_3] : memref<64x3xf32, #tpu.memory_space<vmem>>, vector<64x3xf32>
    %cst = arith.constant dense<0.000000e+00> : vector<64x128xf32>
    %3 = tpu.matmul %2, %1, %cst {dimension_numbers = #tpu.dot_dimension_numbers<[1], [0], [0], [1], [0, 0, 1, 1], [], []>} : vector<64x3xf32>, vector<3x128xf32>, vector<64x128xf32> -> vector<64x128xf32>
    %c0_4 = arith.constant 0 : index
    %c0_5 = arith.constant 0 : index
    %4 = vector.load %arg4[%c0_4, %c0_5] : memref<64x1xf32, #tpu.memory_space<vmem>>, vector<64x1xf32>
    %5 = vector.broadcast %4 : vector<64x1xf32> to vector<64x128xf32>
    %6 = arith.addf %3, %5 : vector<64x128xf32>
    %cst_6 = arith.constant 0.000000e+00 : f32
    %7 = vector.broadcast %cst_6 : f32 to vector<64x128xf32>
    %8 = arith.maximumf %6, %7 : vector<64x128xf32>
    %c0_7 = arith.constant 0 : index
    %c0_8 = arith.constant 0 : index
    %c0_9 = arith.constant 0 : index
    %9 = vector.load %arg9[%c0_7, %c0_8, %c0_9] : memref<1x64x128xf32, #tpu.memory_space<vmem>>, vector<1x64x128xf32>
    %10 = vector.shape_cast %9 : vector<1x64x128xf32> to vector<64x128xf32>
    %11 = vector.shape_cast %8 : vector<64x128xf32> to vector<1x64x128xf32>
    tpu.vector_store %arg9[%c0_7, %c0_8, %c0_9], %11 {strides = array<i32>} : memref<1x64x128xf32, #tpu.memory_space<vmem>>, vector<1x64x128xf32>,
    %c0_10 = arith.constant 0 : index
    %c0_11 = arith.constant 0 : index
    %12 = vector.load %arg5[%c0_10, %c0_11] : memref<128x64xf32, #tpu.memory_space<vmem>>, vector<128x64xf32>
    %cst_12 = arith.constant dense<0.000000e+00> : vector<128x128xf32>
    %13 = tpu.matmul %12, %8, %cst_12 {dimension_numbers = #tpu.dot_dimension_numbers<[1], [0], [0], [1], [0, 0, 1, 1], [], []>} : vector<128x64xf32>, vector<64x128xf32>, vector<128x128xf32> -> vector<128x128xf32>
    %c0_13 = arith.constant 0 : index
    %c0_14 = arith.constant 0 : index
    %14 = vector.load %arg6[%c0_13, %c0_14] : memref<128x1xf32, #tpu.memory_space<vmem>>, vector<128x1xf32>
    %15 = vector.broadcast %14 : vector<128x1xf32> to vector<128x128xf32>
    %16 = arith.addf %13, %15 : vector<128x128xf32>
    %cst_15 = arith.constant 0.000000e+00 : f32
    %17 = vector.broadcast %cst_15 : f32 to vector<128x128xf32>
    %18 = arith.maximumf %16, %17 : vector<128x128xf32>
    %c0_16 = arith.constant 0 : index
    %c0_17 = arith.constant 0 : index
    %19 = vector.load %arg7[%c0_16, %c0_17] : memref<256x128xf32, #tpu.memory_space<vmem>>, vector<256x128xf32>
    %cst_18 = arith.constant dense<0.000000e+00> : vector<256x128xf32>
    %20 = tpu.matmul %19, %18, %cst_18 {dimension_numbers = #tpu.dot_dimension_numbers<[1], [0], [0], [1], [0, 0, 1, 1], [], []>} : vector<256x128xf32>, vector<128x128xf32>, vector<256x128xf32> -> vector<256x128xf32>
    %c0_19 = arith.constant 0 : index
    %c0_20 = arith.constant 0 : index
    %21 = vector.load %arg8[%c0_19, %c0_20] : memref<256x1xf32, #tpu.memory_space<vmem>>, vector<256x1xf32>
    %22 = vector.broadcast %21 : vector<256x1xf32> to vector<256x128xf32>
    %23 = arith.addf %20, %22 : vector<256x128xf32>
    %c0_i32 = arith.constant 0 : i32
    %24 = arith.cmpi eq, %arg1, %c0_i32 : i32
    %25 = arith.extui %24 : i1 to i32
    %c0_i32_21 = arith.constant 0 : i32
    %26 = arith.cmpi ne, %25, %c0_i32_21 : i32
    scf.if %26 {
      %cst_27 = arith.constant 0xFF800000 : f32
      %36 = vector.broadcast %cst_27 : f32 to vector<256x1xf32>
      %c0_28 = arith.constant 0 : index
      %c0_29 = arith.constant 0 : index
      %37 = vector.load %arg11[%c0_28, %c0_29] : memref<256x1xf32, #tpu.memory_space<vmem>>, vector<256x1xf32>
      tpu.vector_store %arg11[%c0_28, %c0_29], %36 {strides = array<i32>} : memref<256x1xf32, #tpu.memory_space<vmem>>, vector<256x1xf32>,
    } else {
    }
    %c1_i32 = arith.constant 1 : i32
    %27 = arith.cmpi ne, %arg1, %c1_i32 : i32
    %28 = arith.extui %27 : i1 to i32
    %c0_i32_22 = arith.constant 0 : i32
    %29 = arith.cmpi ne, %28, %c0_i32_22 : i32
    scf.if %29 {
      %c0_27 = arith.constant 0 : index
      %c0_28 = arith.constant 0 : index
      %36 = vector.load %arg11[%c0_27, %c0_28] : memref<256x1xf32, #tpu.memory_space<vmem>>, vector<256x1xf32>
      %cst_29 = arith.constant dense<0xFF800000> : vector<256xf32>
      %37 = vector.multi_reduction <maximumf>, %23, %cst_29 [1] : vector<256x128xf32> to vector<256xf32>
      %38 = vector.shape_cast %37 : vector<256xf32> to vector<256x1xf32>
      %39 = arith.maximumf %36, %38 : vector<256x1xf32>
      %c0_30 = arith.constant 0 : index
      %c0_31 = arith.constant 0 : index
      %40 = vector.load %arg11[%c0_30, %c0_31] : memref<256x1xf32, #tpu.memory_space<vmem>>, vector<256x1xf32>
      tpu.vector_store %arg11[%c0_30, %c0_31], %39 {strides = array<i32>} : memref<256x1xf32, #tpu.memory_space<vmem>>, vector<256x1xf32>,
    } else {
    }
    %c1_i32_23 = arith.constant 1 : i32
    %30 = arith.cmpi eq, %arg1, %c1_i32_23 : i32
    %31 = arith.extui %30 : i1 to i32
    %c0_i32_24 = arith.constant 0 : i32
    %32 = arith.cmpi ne, %31, %c0_i32_24 : i32
    scf.if %32 {
      %36 = tpu.iota {dimensions = array<i32: 1>} : vector<256x128xi32>
      %c128_i32 = arith.constant 128 : i32
      %37 = arith.muli %arg1, %c128_i32 : i32
      %38 = vector.broadcast %37 : i32 to vector<256x128xi32>
      %39 = arith.addi %38, %36 : vector<256x128xi32>
      %c200_i32 = arith.constant 200 : i32
      %40 = vector.broadcast %c200_i32 : i32 to vector<256x128xi32>
      %41 = arith.cmpi slt, %39, %40 : vector<256x128xi32>
      %cst_27 = arith.constant 0xFF800000 : f32
      %42 = vector.broadcast %cst_27 : f32 to vector<256x128xf32>
      %43 = arith.select %41, %23, %42 : vector<256x128xi1>, vector<256x128xf32>
      %c0_28 = arith.constant 0 : index
      %c0_29 = arith.constant 0 : index
      %44 = vector.load %arg11[%c0_28, %c0_29] : memref<256x1xf32, #tpu.memory_space<vmem>>, vector<256x1xf32>
      %cst_30 = arith.constant dense<0xFF800000> : vector<256xf32>
      %45 = vector.multi_reduction <maximumf>, %43, %cst_30 [1] : vector<256x128xf32> to vector<256xf32>
      %46 = vector.shape_cast %45 : vector<256xf32> to vector<256x1xf32>
      %47 = arith.maximumf %44, %46 : vector<256x1xf32>
      %c0_31 = arith.constant 0 : index
      %c0_32 = arith.constant 0 : index
      %48 = vector.load %arg11[%c0_31, %c0_32] : memref<256x1xf32, #tpu.memory_space<vmem>>, vector<256x1xf32>
      tpu.vector_store %arg11[%c0_31, %c0_32], %47 {strides = array<i32>} : memref<256x1xf32, #tpu.memory_space<vmem>>, vector<256x1xf32>,
    } else {
    }
    %c1_i32_25 = arith.constant 1 : i32
    %33 = arith.cmpi eq, %arg1, %c1_i32_25 : i32
    %34 = arith.extui %33 : i1 to i32
    %c0_i32_26 = arith.constant 0 : i32
    %35 = arith.cmpi ne, %34, %c0_i32_26 : i32
    scf.if %35 {
      %c0_27 = arith.constant 0 : index
      %c0_28 = arith.constant 0 : index
      %36 = vector.load %arg11[%c0_27, %c0_28] : memref<256x1xf32, #tpu.memory_space<vmem>>, vector<256x1xf32>
      %c0_29 = arith.constant 0 : index
      %c0_30 = arith.constant 0 : index
      %c0_31 = arith.constant 0 : index
      %37 = vector.load %arg10[%c0_29, %c0_30, %c0_31] : memref<1x256x1xf32, #tpu.memory_space<vmem>>, vector<1x256x1xf32>
      %38 = vector.shape_cast %37 : vector<1x256x1xf32> to vector<256x1xf32>
      %39 = vector.shape_cast %36 : vector<256x1xf32> to vector<1x256x1xf32>
      tpu.vector_store %arg10[%c0_29, %c0_30, %c0_31], %39 {strides = array<i32>} : memref<1x256x1xf32, #tpu.memory_space<vmem>>, vector<1x256x1xf32>,
    } else {
    }
    return
  }
  func.func @transform_0(%arg0: i32, %arg1: i32) -> (i32, i32, i32) {
    %c0_i32 = arith.constant 0 : i32
    %c0_i32_0 = arith.constant 0 : i32
    return %arg0, %c0_i32, %arg1 : i32, i32, i32
  }
  func.func @transform_1(%arg0: i32, %arg1: i32) -> (i32, i32) {
    %c0_i32 = arith.constant 0 : i32
    %c0_i32_0 = arith.constant 0 : i32
    %c0_i32_1 = arith.constant 0 : i32
    return %c0_i32, %c0_i32_0 : i32, i32
  }
  func.func @transform_2(%arg0: i32, %arg1: i32) -> (i32, i32) {
    %c0_i32 = arith.constant 0 : i32
    %c0_i32_0 = arith.constant 0 : i32
    %c0_i32_1 = arith.constant 0 : i32
    return %c0_i32, %c0_i32_0 : i32, i32
  }
  func.func @transform_3(%arg0: i32, %arg1: i32) -> (i32, i32) {
    %c0_i32 = arith.constant 0 : i32
    %c0_i32_0 = arith.constant 0 : i32
    %c0_i32_1 = arith.constant 0 : i32
    return %c0_i32, %c0_i32_0 : i32, i32
  }
  func.func @transform_4(%arg0: i32, %arg1: i32) -> (i32, i32) {
    %c0_i32 = arith.constant 0 : i32
    %c0_i32_0 = arith.constant 0 : i32
    %c0_i32_1 = arith.constant 0 : i32
    return %c0_i32, %c0_i32_0 : i32, i32
  }
  func.func @transform_5(%arg0: i32, %arg1: i32) -> (i32, i32) {
    %c0_i32 = arith.constant 0 : i32
    %c0_i32_0 = arith.constant 0 : i32
    %c0_i32_1 = arith.constant 0 : i32
    return %c0_i32, %c0_i32_0 : i32, i32
  }
  func.func @transform_6(%arg0: i32, %arg1: i32) -> (i32, i32) {
    %c0_i32 = arith.constant 0 : i32
    %c0_i32_0 = arith.constant 0 : i32
    %c0_i32_1 = arith.constant 0 : i32
    return %c0_i32, %c0_i32_0 : i32, i32
  }
  func.func @transform_7(%arg0: i32, %arg1: i32) -> (i32, i32, i32) {
    %c4_i32 = arith.constant 4 : i32
    %c0_i32 = arith.constant 0 : i32
    return %arg0, %c4_i32, %arg1 : i32, i32, i32
  }
  func.func @transform_8(%arg0: i32, %arg1: i32) -> (i32, i32, i32) {
    %c0_i32 = arith.constant 0 : i32
    %c0_i32_0 = arith.constant 0 : i32
    %c0_i32_1 = arith.constant 0 : i32
    return %arg0, %c0_i32, %c0_i32_0 : i32, i32, i32
  }
}

module attributes {stable_mosaic.version = 11 : i64} {
  func.func @_broadcast_kernel(%arg0: i32, %arg1: i32, %arg2: memref<1x256x1xf32, #tpu.memory_space<vmem>>, %arg3: memref<2x320x200xf32, #tpu.memory_space<any>>, %arg4: memref<1x256x128xf32, #tpu.memory_space<vmem>>) attributes {dimension_semantics = [#tpu.dimension_semantics<parallel>, #tpu.dimension_semantics<parallel>], iteration_bounds = array<i64: 2, 2>, scalar_prefetch = 0 : i64, scratch_operands = 0 : i64, tpu.core_type = #tpu.core_type<tc>, window_params = [{transform_indices = @transform_0, window_bounds = array<i64: 1, 256, 1>}, {}, {transform_indices = @transform_2, window_bounds = array<i64: 1, 256, 128>}]} {
    %c0 = arith.constant 0 : index
    %c0_0 = arith.constant 0 : index
    %c0_1 = arith.constant 0 : index
    %0 = vector.load %arg2[%c0, %c0_0, %c0_1] : memref<1x256x1xf32, #tpu.memory_space<vmem>>, vector<1x256x1xf32>
    %1 = vector.shape_cast %0 : vector<1x256x1xf32> to vector<256x1xf32>
    %2 = vector.shape_cast %1 : vector<256x1xf32> to vector<256x1xf32>
    %3 = vector.broadcast %2 : vector<256x1xf32> to vector<256x128xf32>
    %c0_2 = arith.constant 0 : index
    %c0_3 = arith.constant 0 : index
    %c0_4 = arith.constant 0 : index
    %4 = vector.load %arg4[%c0_2, %c0_3, %c0_4] : memref<1x256x128xf32, #tpu.memory_space<vmem>>, vector<1x256x128xf32>
    %5 = vector.shape_cast %4 : vector<1x256x128xf32> to vector<256x128xf32>
    %6 = vector.shape_cast %3 : vector<256x128xf32> to vector<1x256x128xf32>
    tpu.vector_store %arg4[%c0_2, %c0_3, %c0_4], %6 {strides = array<i32>} : memref<1x256x128xf32, #tpu.memory_space<vmem>>, vector<1x256x128xf32>,
    return
  }
  func.func @transform_0(%arg0: i32, %arg1: i32) -> (i32, i32, i32) {
    %c0_i32 = arith.constant 0 : i32
    %c0_i32_0 = arith.constant 0 : i32
    %c0_i32_1 = arith.constant 0 : i32
    return %arg0, %c0_i32, %c0_i32_0 : i32, i32, i32
  }
  func.func @transform_2(%arg0: i32, %arg1: i32) -> (i32, i32, i32) {
    %c0_i32 = arith.constant 0 : i32
    %c0_i32_0 = arith.constant 0 : i32
    return %arg0, %c0_i32, %arg1 : i32, i32, i32
  }
}

</mosaic_0001>

<llo_original>
// kernel: _forward.3
$region0: #{_forward.3}
  #allocation0 [shape = 'u32[]', space=smem, size = 0x4, offset = 0x4, fixed_abs, tag = 'smem constant byte address 0x4 - core index']
  #allocation1 [shape = 'u32[144,128]{1,0:T(1,128)}', space=vmem, size = 0x12000, scoped, tag = 'internal scratch']
  %s0 = inlined_call_operand.vmem [shape: f32[2,256,1], index: 0, kind: input, shape index: {}]
  %s1 = inlined_call_operand.vmem [shape: f32[2,320,200], index: 1, kind: input, shape index: {}, may-alias: {1,2}]
  %s2 = inlined_call_operand.vmem [shape: f32[2,320,200], index: 2, kind: output, shape index: {}, may-alias: {1,2}]
  %s3 = sld [smem:[#allocation0]]
  $region71: #{_forward.3} parent=0
    _
  %s5 = ssub.s32 1, %s3
  %s6 = scalar_select 0, %s5, %s3
  $region1: #{_forward.3} parent=0
    #allocation2 [shape = 'u8[262144]{0}', space=vmem, size = 0x40000, scoped, tag = 'output window, operand 0']
    loop: start=0, step=1, limit=6
    $region2: #{_forward.3} parent=1 // loop_pre_header
      _
    $region3: #{_forward.3} parent=1 // loop_header
      %s8 = sphi 0, %s12
      %p9 = scmp.ge.s32.totalorder %s8, 6
      %s15 = sphi 0, %s27
      %s16 = sphi 0, %s23
      %s17 = sphi 0, %s15
      %s18 = sphi 0, %s16
      %s19 = sphi 0, %s17
      %s20 = sphi 0, %s18
      %s30 = sphi 0, %s32
      %s33 = sphi 0, %s30
      %s34 = sphi 0, %s33
      %s50 = sphi 0, %s34
      %s58 = sphi 0, %s60
      %s61 = sphi 0, %s58
      %s62 = sphi 0, %s61
      %s78 = sphi 0, %s62
    $region4: #{_forward.3} parent=1 // loop_header_branch
      %11 = sbr.rel (%p9) target = $region8
    $region5: #{_forward.3} parent=1 // loop_body
      %s13 = ssub.s32 %s8, 1
      %s14 = ssub.s32 %s8, 2
      %s21 = sadd.s32 1, %s16
      %p22 = scmp.ge.s32.totalorder %s21, 2
      %s23 = scalar_select %p22, 0, %s21
      %s24 = sadd.s32 1, %s15
      %s25 = scalar_select %p22, %s24, %s15
      %p26 = scmp.ge.s32.totalorder %s25, 2
      %s27 = scalar_select %p26, 0, %s25
      %s28 = ssub.s32 %s15, %s27
      %p29 = scmp.eq.s32.totalorder %s28, 0
      %s31 = sadd.s32 %s30, 1
      %s32 = scalar_select %p29, %s30, %s31
      %p35 = pneg %p29
      %p36 = scmp.eq.s32.totalorder %s8, 3
      %p37 = por %p35, %p36
      %p38 = scmp.ne.s32.totalorder %s30, %s33
      %p39 = scmp.eq.s32.totalorder %s8, 0
      %p40 = por %p38, %p39
      %p41 = scmp.ne.s32.totalorder %s30, %s33
      %p42 = scmp.eq.s32.totalorder %s13, 3
      %p43 = por %p41, %p42
      %p44 = scmp.ne.s32.totalorder %s33, %s34
      %p45 = scmp.eq.s32.totalorder %s13, 0
      %p46 = por %p44, %p45
      %p47 = scmp.ne.s32.totalorder %s33, %s34
      %p48 = scmp.eq.s32.totalorder %s14, 3
      %p49 = por %p47, %p48
      %p51 = scmp.ne.s32.totalorder %s34, %s50
      %p52 = scmp.eq.s32.totalorder %s14, 0
      %p53 = por %p51, %p52
      %s54 = ssub.s32 %s15, %s27
      %s55 = ssub.s32 %s16, %s23
      %s56 = sor.u32 %s54, %s55
      %p57 = scmp.eq.s32.totalorder %s56, 0
      %s59 = sadd.s32 %s58, 1
      %s60 = scalar_select %p57, %s58, %s59
      %p63 = pneg %p57
      %p64 = scmp.eq.s32.totalorder %s8, 3
      %p65 = por %p63, %p64
      %p66 = scmp.ne.s32.totalorder %s58, %s61
      %p67 = scmp.eq.s32.totalorder %s8, 0
      %p68 = por %p66, %p67
      %p69 = scmp.ne.s32.totalorder %s58, %s61
      %p70 = scmp.eq.s32.totalorder %s13, 3
      %p71 = por %p69, %p70
      %p72 = scmp.ne.s32.totalorder %s61, %s62
      %p73 = scmp.eq.s32.totalorder %s13, 0
      %p74 = por %p72, %p73
      %p75 = scmp.ne.s32.totalorder %s61, %s62
      %p76 = scmp.eq.s32.totalorder %s14, 3
      %p77 = por %p75, %p76
      %p79 = scmp.ne.s32.totalorder %s62, %s78
      %p80 = scmp.eq.s32.totalorder %s14, 0
      %p81 = por %p79, %p80
      %p82 = scmp.le.s32.totalorder 1, %s8
      %p83 = scmp.lt.s32.totalorder %s8, 5
      %p84 = pnand %p82, %p83
      %p85 = pneg %p84
      // Predicated region
      $region9: #{_forward.3} parent=5 // pred_check
        _
      $region10: #{_forward.3} parent=5 // pred_check_branch
        %87 = sbr.rel (%p84) target = $region12
      $region11: #{_forward.3} parent=5 // pred_region
        %s88 = ssub.s32 %s8, 1
      $region12: #{_forward.3} parent=5 // pred_fallthru
        _
      %p89 = scmp.lt.s32.totalorder %s8, 4
      // Predicated region
      $region13: #{_forward.3} parent=5 // pred_check
        %p90 = pneg %p89
      $region14: #{_forward.3} parent=5 // pred_check_branch
        %92 = sbr.rel (%p90) target = $region16
      $region15: #{_forward.3} parent=5 // pred_region
        // Predicated region
        $region17: #{_forward.3} parent=15 // pred_check
          %p93 = pneg %p40
        $region18: #{_forward.3} parent=15 // pred_check_branch
          %95 = sbr.rel (%p93) target = $region20
        $region19: #{_forward.3} parent=15 // pred_region
          %p96 = scmp.lt.s32.totalorder %s15, 1
          %s97 = scalar_select %p96, %s15, 1
          %s98 = smul.addr %s97, 32
          %s99 = smul.addr %s98, 8
          %s100 = scalar_lea.vmem %s0, %s99
        $region20: #{_forward.3} parent=15 // pred_fallthru
          _
      $region16: #{_forward.3} parent=5 // pred_fallthru
        _
      %p101 = scmp.le.s32.totalorder 1, %s8
      %p102 = scmp.lt.s32.totalorder %s8, 5
      %p103 = pnand %p101, %p102
      %p104 = pneg %p103
      // Predicated region
      $region21: #{_forward.3} parent=5 // pred_check
        _
      $region22: #{_forward.3} parent=5 // pred_check_branch
        %106 = sbr.rel (%p103) target = $region24
      $region23: #{_forward.3} parent=5 // pred_region
        %s107 = ssub.s32 %s8, 1
        %p108 = scmp.lt.s32.totalorder %s17, 1
        %s109 = scalar_select %p108, %s17, 1
        %s110 = smul.addr %s109, 32
        %s111 = smul.addr %s110, 8
        %s112 = scalar_lea.vmem %s0, %s111
        %p113 = pneg %p46
        %p114 = pneg %p43
        %p115 = pneg %p74
        %p116 = pneg %p71
        %s117 = sand.u32 %s61, 1
        %s118 = sand.u32 %s61, 1
        %s119 = smul.addr %s118, 256
        %s120 = scalar_lea.vmem [#allocation2], %s119
        %p121 = scmp.lt.s32.totalorder %s17, 1
        %s122 = scalar_select %p121, %s17, 1
        %s123 = smul.addr %s122, 32
        %s124 = smul.addr %s123, 8
        %s125 = scalar_lea.vmem %s0, %s124
        %v126 = vld [vmem:[%s125] sm:$0xff]
        %v127 = vld [vmem:[%s125 + $0x8] sm:$0xff]
        %v128 = vld [vmem:[%s125 + $0x10] sm:$0xff]
        %v129 = vld [vmem:[%s125 + $0x18] sm:$0xff]
        %v130 = vld [vmem:[%s125 + $0x20] sm:$0xff]
        %v131 = vld [vmem:[%s125 + $0x28] sm:$0xff]
        %v132 = vld [vmem:[%s125 + $0x30] sm:$0xff]
        %v133 = vld [vmem:[%s125 + $0x38] sm:$0xff]
        %v134 = vld [vmem:[%s125 + $0x40] sm:$0xff]
        %v135 = vld [vmem:[%s125 + $0x48] sm:$0xff]
        %v136 = vld [vmem:[%s125 + $0x50] sm:$0xff]
        %v137 = vld [vmem:[%s125 + $0x58] sm:$0xff]
        %v138 = vld [vmem:[%s125 + $0x60] sm:$0xff]
        %v139 = vld [vmem:[%s125 + $0x68] sm:$0xff]
        %v140 = vld [vmem:[%s125 + $0x70] sm:$0xff]
        %v141 = vld [vmem:[%s125 + $0x78] sm:$0xff]
        %v142 = vld [vmem:[%s125 + $0x80] sm:$0xff]
        %v143 = vld [vmem:[%s125 + $0x88] sm:$0xff]
        %v144 = vld [vmem:[%s125 + $0x90] sm:$0xff]
        %v145 = vld [vmem:[%s125 + $0x98] sm:$0xff]
        %v146 = vld [vmem:[%s125 + $0xa0] sm:$0xff]
        %v147 = vld [vmem:[%s125 + $0xa8] sm:$0xff]
        %v148 = vld [vmem:[%s125 + $0xb0] sm:$0xff]
        %v149 = vld [vmem:[%s125 + $0xb8] sm:$0xff]
        %v150 = vld [vmem:[%s125 + $0xc0] sm:$0xff]
        %v151 = vld [vmem:[%s125 + $0xc8] sm:$0xff]
        %v152 = vld [vmem:[%s125 + $0xd0] sm:$0xff]
        %v153 = vld [vmem:[%s125 + $0xd8] sm:$0xff]
        %v154 = vld [vmem:[%s125 + $0xe0] sm:$0xff]
        %v155 = vld [vmem:[%s125 + $0xe8] sm:$0xff]
        %v156 = vld [vmem:[%s125 + $0xf0] sm:$0xff]
        %v157 = vld [vmem:[%s125 + $0xf8] sm:$0xff]
        %159 = vset.pattern.permute.xlu0 0
        %160 = vperm.xlu0 %159, %v126
        %v161 = vpop.permute.xlu0 %160
        %164 = vset.pattern.permute.xlu0 0
        %165 = vperm.xlu0 %164, %v127
        %v166 = vpop.permute.xlu0 %165
        %169 = vset.pattern.permute.xlu0 0
        %170 = vperm.xlu0 %169, %v128
        %v171 = vpop.permute.xlu0 %170
        %174 = vset.pattern.permute.xlu0 0
        %175 = vperm.xlu0 %174, %v129
        %v176 = vpop.permute.xlu0 %175
        %179 = vset.pattern.permute.xlu0 0
        %180 = vperm.xlu0 %179, %v130
        %v181 = vpop.permute.xlu0 %180
        %184 = vset.pattern.permute.xlu0 0
        %185 = vperm.xlu0 %184, %v131
        %v186 = vpop.permute.xlu0 %185
        %189 = vset.pattern.permute.xlu0 0
        %190 = vperm.xlu0 %189, %v132
        %v191 = vpop.permute.xlu0 %190
        %194 = vset.pattern.permute.xlu0 0
        %195 = vperm.xlu0 %194, %v133
        %v196 = vpop.permute.xlu0 %195
        %199 = vset.pattern.permute.xlu0 0
        %200 = vperm.xlu0 %199, %v134
        %v201 = vpop.permute.xlu0 %200
        %204 = vset.pattern.permute.xlu0 0
        %205 = vperm.xlu0 %204, %v135
        %v206 = vpop.permute.xlu0 %205
        %209 = vset.pattern.permute.xlu0 0
        %210 = vperm.xlu0 %209, %v136
        %v211 = vpop.permute.xlu0 %210
        %214 = vset.pattern.permute.xlu0 0
        %215 = vperm.xlu0 %214, %v137
        %v216 = vpop.permute.xlu0 %215
        %219 = vset.pattern.permute.xlu0 0
        %220 = vperm.xlu0 %219, %v138
        %v221 = vpop.permute.xlu0 %220
        %224 = vset.pattern.permute.xlu0 0
        %225 = vperm.xlu0 %224, %v139
        %v226 = vpop.permute.xlu0 %225
        %229 = vset.pattern.permute.xlu0 0
        %230 = vperm.xlu0 %229, %v140
        %v231 = vpop.permute.xlu0 %230
        %234 = vset.pattern.permute.xlu0 0
        %235 = vperm.xlu0 %234, %v141
        %v236 = vpop.permute.xlu0 %235
        %239 = vset.pattern.permute.xlu0 0
        %240 = vperm.xlu0 %239, %v142
        %v241 = vpop.permute.xlu0 %240
        %244 = vset.pattern.permute.xlu0 0
        %245 = vperm.xlu0 %244, %v143
        %v246 = vpop.permute.xlu0 %245
        %249 = vset.pattern.permute.xlu0 0
        %250 = vperm.xlu0 %249, %v144
        %v251 = vpop.permute.xlu0 %250
        %254 = vset.pattern.permute.xlu0 0
        %255 = vperm.xlu0 %254, %v145
        %v256 = vpop.permute.xlu0 %255
        %259 = vset.pattern.permute.xlu0 0
        %260 = vperm.xlu0 %259, %v146
        %v261 = vpop.permute.xlu0 %260
        %264 = vset.pattern.permute.xlu0 0
        %265 = vperm.xlu0 %264, %v147
        %v266 = vpop.permute.xlu0 %265
        %269 = vset.pattern.permute.xlu0 0
        %270 = vperm.xlu0 %269, %v148
        %v271 = vpop.permute.xlu0 %270
        %274 = vset.pattern.permute.xlu0 0
        %275 = vperm.xlu0 %274, %v149
        %v276 = vpop.permute.xlu0 %275
        %279 = vset.pattern.permute.xlu0 0
        %280 = vperm.xlu0 %279, %v150
        %v281 = vpop.permute.xlu0 %280
        %284 = vset.pattern.permute.xlu0 0
        %285 = vperm.xlu0 %284, %v151
        %v286 = vpop.permute.xlu0 %285
        %289 = vset.pattern.permute.xlu0 0
        %290 = vperm.xlu0 %289, %v152
        %v291 = vpop.permute.xlu0 %290
        %294 = vset.pattern.permute.xlu0 0
        %295 = vperm.xlu0 %294, %v153
        %v296 = vpop.permute.xlu0 %295
        %299 = vset.pattern.permute.xlu0 0
        %300 = vperm.xlu0 %299, %v154
        %v301 = vpop.permute.xlu0 %300
        %304 = vset.pattern.permute.xlu0 0
        %305 = vperm.xlu0 %304, %v155
        %v306 = vpop.permute.xlu0 %305
        %309 = vset.pattern.permute.xlu0 0
        %310 = vperm.xlu0 %309, %v156
        %v311 = vpop.permute.xlu0 %310
        %314 = vset.pattern.permute.xlu0 0
        %315 = vperm.xlu0 %314, %v157
        %v316 = vpop.permute.xlu0 %315
        %318 = vst [vmem:[%s120] sm:$0xff] %v161
        %319 = vst [vmem:[%s120 + $0x8] sm:$0xff] %v166
        %320 = vst [vmem:[%s120 + $0x10] sm:$0xff] %v171
        %321 = vst [vmem:[%s120 + $0x18] sm:$0xff] %v176
        %322 = vst [vmem:[%s120 + $0x20] sm:$0xff] %v181
        %323 = vst [vmem:[%s120 + $0x28] sm:$0xff] %v186
        %324 = vst [vmem:[%s120 + $0x30] sm:$0xff] %v191
        %325 = vst [vmem:[%s120 + $0x38] sm:$0xff] %v196
        %326 = vst [vmem:[%s120 + $0x40] sm:$0xff] %v201
        %327 = vst [vmem:[%s120 + $0x48] sm:$0xff] %v206
        %328 = vst [vmem:[%s120 + $0x50] sm:$0xff] %v211
        %329 = vst [vmem:[%s120 + $0x58] sm:$0xff] %v216
        %330 = vst [vmem:[%s120 + $0x60] sm:$0xff] %v221
        %331 = vst [vmem:[%s120 + $0x68] sm:$0xff] %v226
        %332 = vst [vmem:[%s120 + $0x70] sm:$0xff] %v231
        %333 = vst [vmem:[%s120 + $0x78] sm:$0xff] %v236
        %334 = vst [vmem:[%s120 + $0x80] sm:$0xff] %v241
        %335 = vst [vmem:[%s120 + $0x88] sm:$0xff] %v246
        %336 = vst [vmem:[%s120 + $0x90] sm:$0xff] %v251
        %337 = vst [vmem:[%s120 + $0x98] sm:$0xff] %v256
        %338 = vst [vmem:[%s120 + $0xa0] sm:$0xff] %v261
        %339 = vst [vmem:[%s120 + $0xa8] sm:$0xff] %v266
        %340 = vst [vmem:[%s120 + $0xb0] sm:$0xff] %v271
        %341 = vst [vmem:[%s120 + $0xb8] sm:$0xff] %v276
        %342 = vst [vmem:[%s120 + $0xc0] sm:$0xff] %v281
        %343 = vst [vmem:[%s120 + $0xc8] sm:$0xff] %v286
        %344 = vst [vmem:[%s120 + $0xd0] sm:$0xff] %v291
        %345 = vst [vmem:[%s120 + $0xd8] sm:$0xff] %v296
        %346 = vst [vmem:[%s120 + $0xe0] sm:$0xff] %v301
        %347 = vst [vmem:[%s120 + $0xe8] sm:$0xff] %v306
        %348 = vst [vmem:[%s120 + $0xf0] sm:$0xff] %v311
        %349 = vst [vmem:[%s120 + $0xf8] sm:$0xff] %v316
        %s350 = sand.u32 %s61, 1
        %s351 = sand.u32 %s61, 1
        %s352 = smul.addr %s351, 256
        %s353 = scalar_lea.vmem [#allocation2], %s352
        // Predicated region
        $region25: #{_forward.3} parent=23 // pred_check
          %p354 = pneg %p71
        $region26: #{_forward.3} parent=23 // pred_check_branch
          %356 = sbr.rel (%p354) target = $region28
        $region27: #{_forward.3} parent=23 // pred_region
          %s357 = smul.addr %s17, 80
          %s358 = sadd.s32 %s18, %s357
          %s359 = smul.addr %s358, 8
          %s360 = scalar_lea.vmem %s2, %s359
          // Predicated region
          $region29: #{_forward.3} parent=27 // pred_check
            _
          $region30: #{_forward.3} parent=27 // pred_check_branch
            %362 = sbr.rel (0) target = $region32
          $region31: #{_forward.3} parent=27 // pred_region
            // Predicated region
            $region33: #{_forward.3} parent=31 // pred_check
              _
            $region34: #{_forward.3} parent=31 // pred_check_branch
              %364 = sbr.rel (0) target = $region36
            $region35: #{_forward.3} parent=31 // pred_region
              // Predicated region
              $region48: #{_forward.3} parent=35 // pred_check
                _
              $region49: #{_forward.3} parent=35 // pred_check_branch
                %442 = sbr.rel (0) target = $region51
              $region50: #{_forward.3} parent=35 // pred_region
                loop: start=0, step=1, limit=1
                $region52: #{_forward.3} parent=50 // loop_pre_header
                  _
                $region53: #{_forward.3} parent=50 // loop_header
                  %s444 = sphi 0, %s448
                  %p445 = scmp.ge.s32.totalorder %s444, 1
                  %s449 = sphi %s353, %s353
                  %s450 = sphi %s360, %s360
                $region54: #{_forward.3} parent=50 // loop_header_branch
                  %447 = sbr.rel (%p445) target = $region58
                $region55: #{_forward.3} parent=50 // loop_body
                  %v451 = vld [vmem:[%s449] sm:$0xff]
                  %452 = vst [vmem:[%s450] sm:$0xff] %v451
                  %v453 = vld [vmem:[%s449 + $0x8] sm:$0xff]
                  %454 = vst [vmem:[%s450 + $0x10] sm:$0xff] %v453
                  %v455 = vld [vmem:[%s449 + $0x10] sm:$0xff]
                  %456 = vst [vmem:[%s450 + $0x20] sm:$0xff] %v455
                  %v457 = vld [vmem:[%s449 + $0x18] sm:$0xff]
                  %458 = vst [vmem:[%s450 + $0x30] sm:$0xff] %v457
                  %v459 = vld [vmem:[%s449 + $0x20] sm:$0xff]
                  %460 = vst [vmem:[%s450 + $0x40] sm:$0xff] %v459
                  %v461 = vld [vmem:[%s449 + $0x28] sm:$0xff]
                  %462 = vst [vmem:[%s450 + $0x50] sm:$0xff] %v461
                  %v463 = vld [vmem:[%s449 + $0x30] sm:$0xff]
                  %464 = vst [vmem:[%s450 + $0x60] sm:$0xff] %v463
                  %v465 = vld [vmem:[%s449 + $0x38] sm:$0xff]
                  %466 = vst [vmem:[%s450 + $0x70] sm:$0xff] %v465
                  %v467 = vld [vmem:[%s449 + $0x40] sm:$0xff]
                  %468 = vst [vmem:[%s450 + $0x80] sm:$0xff] %v467
                  %v469 = vld [vmem:[%s449 + $0x48] sm:$0xff]
                  %470 = vst [vmem:[%s450 + $0x90] sm:$0xff] %v469
                  %v471 = vld [vmem:[%s449 + $0x50] sm:$0xff]
                  %472 = vst [vmem:[%s450 + $0xa0] sm:$0xff] %v471
                  %v473 = vld [vmem:[%s449 + $0x58] sm:$0xff]
                  %474 = vst [vmem:[%s450 + $0xb0] sm:$0xff] %v473
                  %v475 = vld [vmem:[%s449 + $0x60] sm:$0xff]
                  %476 = vst [vmem:[%s450 + $0xc0] sm:$0xff] %v475
                  %v477 = vld [vmem:[%s449 + $0x68] sm:$0xff]
                  %478 = vst [vmem:[%s450 + $0xd0] sm:$0xff] %v477
                  %v479 = vld [vmem:[%s449 + $0x70] sm:$0xff]
                  %480 = vst [vmem:[%s450 + $0xe0] sm:$0xff] %v479
                  %v481 = vld [vmem:[%s449 + $0x78] sm:$0xff]
                  %482 = vst [vmem:[%s450 + $0xf0] sm:$0xff] %v481
                  %v483 = vld [vmem:[%s449 + $0x80] sm:$0xff]
                  %484 = vst [vmem:[%s450 + $0x100] sm:$0xff] %v483
                  %v485 = vld [vmem:[%s449 + $0x88] sm:$0xff]
                  %486 = vst [vmem:[%s450 + $0x110] sm:$0xff] %v485
                  %v487 = vld [vmem:[%s449 + $0x90] sm:$0xff]
                  %488 = vst [vmem:[%s450 + $0x120] sm:$0xff] %v487
                  %v489 = vld [vmem:[%s449 + $0x98] sm:$0xff]
                  %490 = vst [vmem:[%s450 + $0x130] sm:$0xff] %v489
                  %v491 = vld [vmem:[%s449 + $0xa0] sm:$0xff]
                  %492 = vst [vmem:[%s450 + $0x140] sm:$0xff] %v491
                  %v493 = vld [vmem:[%s449 + $0xa8] sm:$0xff]
                  %494 = vst [vmem:[%s450 + $0x150] sm:$0xff] %v493
                  %v495 = vld [vmem:[%s449 + $0xb0] sm:$0xff]
                  %496 = vst [vmem:[%s450 + $0x160] sm:$0xff] %v495
                  %v497 = vld [vmem:[%s449 + $0xb8] sm:$0xff]
                  %498 = vst [vmem:[%s450 + $0x170] sm:$0xff] %v497
                  %v499 = vld [vmem:[%s449 + $0xc0] sm:$0xff]
                  %500 = vst [vmem:[%s450 + $0x180] sm:$0xff] %v499
                  %v501 = vld [vmem:[%s449 + $0xc8] sm:$0xff]
                  %502 = vst [vmem:[%s450 + $0x190] sm:$0xff] %v501
                  %v503 = vld [vmem:[%s449 + $0xd0] sm:$0xff]
                  %504 = vst [vmem:[%s450 + $0x1a0] sm:$0xff] %v503
                  %v505 = vld [vmem:[%s449 + $0xd8] sm:$0xff]
                  %506 = vst [vmem:[%s450 + $0x1b0] sm:$0xff] %v505
                  %v507 = vld [vmem:[%s449 + $0xe0] sm:$0xff]
                  %508 = vst [vmem:[%s450 + $0x1c0] sm:$0xff] %v507
                  %v509 = vld [vmem:[%s449 + $0xe8] sm:$0xff]
                  %510 = vst [vmem:[%s450 + $0x1d0] sm:$0xff] %v509
                  %v511 = vld [vmem:[%s449 + $0xf0] sm:$0xff]
                  %512 = vst [vmem:[%s450 + $0x1e0] sm:$0xff] %v511
                  %v513 = vld [vmem:[%s449 + $0xf8] sm:$0xff]
                  %514 = vst [vmem:[%s450 + $0x1f0] sm:$0xff] %v513
                $region56: #{_forward.3} parent=50 // loop_footer
                  %s448 = sadd.s32 1, %s444
                $region57: #{_forward.3} parent=50 // loop_footer_branch
                  %443 = sbr.rel target = $region53
                $region58: #{_forward.3} parent=50 // loop_exit
                  _
              $region51: #{_forward.3} parent=35 // pred_fallthru
                _
              // Predicated region
              $region59: #{_forward.3} parent=35 // pred_check
                _
              $region60: #{_forward.3} parent=35 // pred_check_branch
                %516 = sbr.rel target = $region62
              $region61: #{_forward.3} parent=35 // pred_region
                _
              $region62: #{_forward.3} parent=35 // pred_fallthru
                _
            $region36: #{_forward.3} parent=31 // pred_fallthru
              _
            // Predicated region
            $region37: #{_forward.3} parent=31 // pred_check
              _
            $region38: #{_forward.3} parent=31 // pred_check_branch
              %366 = sbr.rel target = $region40
            $region39: #{_forward.3} parent=31 // pred_region
              %s368 = ssub.s32 256, 1
              loop: start=0, step=1, limit=1
              $region41: #{_forward.3} parent=39 // loop_pre_header
                _
              $region42: #{_forward.3} parent=39 // loop_header
                %s370 = sphi 0, %s374
                %p371 = scmp.ge.s32.totalorder %s370, 1
                %s375 = sphi %s353, %s353
                %s376 = sphi %s360, %s360
              $region43: #{_forward.3} parent=39 // loop_header_branch
                %373 = sbr.rel (%p371) target = $region47
              $region44: #{_forward.3} parent=39 // loop_body
                %v377 = vld [vmem:[%s375] sm:%s368]
                %378 = vst [vmem:[%s376] sm:%s368] %v377
                %v379 = vld [vmem:[%s375 + $0x8] sm:%s368]
                %380 = vst [vmem:[%s376 + $0x10] sm:%s368] %v379
                %v381 = vld [vmem:[%s375 + $0x10] sm:%s368]
                %382 = vst [vmem:[%s376 + $0x20] sm:%s368] %v381
                %v383 = vld [vmem:[%s375 + $0x18] sm:%s368]
                %384 = vst [vmem:[%s376 + $0x30] sm:%s368] %v383
                %v385 = vld [vmem:[%s375 + $0x20] sm:%s368]
                %386 = vst [vmem:[%s376 + $0x40] sm:%s368] %v385
                %v387 = vld [vmem:[%s375 + $0x28] sm:%s368]
                %388 = vst [vmem:[%s376 + $0x50] sm:%s368] %v387
                %v389 = vld [vmem:[%s375 + $0x30] sm:%s368]
                %390 = vst [vmem:[%s376 + $0x60] sm:%s368] %v389
                %v391 = vld [vmem:[%s375 + $0x38] sm:%s368]
                %392 = vst [vmem:[%s376 + $0x70] sm:%s368] %v391
                %v393 = vld [vmem:[%s375 + $0x40] sm:%s368]
                %394 = vst [vmem:[%s376 + $0x80] sm:%s368] %v393
                %v395 = vld [vmem:[%s375 + $0x48] sm:%s368]
                %396 = vst [vmem:[%s376 + $0x90] sm:%s368] %v395
                %v397 = vld [vmem:[%s375 + $0x50] sm:%s368]
                %398 = vst [vmem:[%s376 + $0xa0] sm:%s368] %v397
                %v399 = vld [vmem:[%s375 + $0x58] sm:%s368]
                %400 = vst [vmem:[%s376 + $0xb0] sm:%s368] %v399
                %v401 = vld [vmem:[%s375 + $0x60] sm:%s368]
                %402 = vst [vmem:[%s376 + $0xc0] sm:%s368] %v401
                %v403 = vld [vmem:[%s375 + $0x68] sm:%s368]
                %404 = vst [vmem:[%s376 + $0xd0] sm:%s368] %v403
                %v405 = vld [vmem:[%s375 + $0x70] sm:%s368]
                %406 = vst [vmem:[%s376 + $0xe0] sm:%s368] %v405
                %v407 = vld [vmem:[%s375 + $0x78] sm:%s368]
                %408 = vst [vmem:[%s376 + $0xf0] sm:%s368] %v407
                %v409 = vld [vmem:[%s375 + $0x80] sm:%s368]
                %410 = vst [vmem:[%s376 + $0x100] sm:%s368] %v409
                %v411 = vld [vmem:[%s375 + $0x88] sm:%s368]
                %412 = vst [vmem:[%s376 + $0x110] sm:%s368] %v411
                %v413 = vld [vmem:[%s375 + $0x90] sm:%s368]
                %414 = vst [vmem:[%s376 + $0x120] sm:%s368] %v413
                %v415 = vld [vmem:[%s375 + $0x98] sm:%s368]
                %416 = vst [vmem:[%s376 + $0x130] sm:%s368] %v415
                %v417 = vld [vmem:[%s375 + $0xa0] sm:%s368]
                %418 = vst [vmem:[%s376 + $0x140] sm:%s368] %v417
                %v419 = vld [vmem:[%s375 + $0xa8] sm:%s368]
                %420 = vst [vmem:[%s376 + $0x150] sm:%s368] %v419
                %v421 = vld [vmem:[%s375 + $0xb0] sm:%s368]
                %422 = vst [vmem:[%s376 + $0x160] sm:%s368] %v421
                %v423 = vld [vmem:[%s375 + $0xb8] sm:%s368]
                %424 = vst [vmem:[%s376 + $0x170] sm:%s368] %v423
                %v425 = vld [vmem:[%s375 + $0xc0] sm:%s368]
                %426 = vst [vmem:[%s376 + $0x180] sm:%s368] %v425
                %v427 = vld [vmem:[%s375 + $0xc8] sm:%s368]
                %428 = vst [vmem:[%s376 + $0x190] sm:%s368] %v427
                %v429 = vld [vmem:[%s375 + $0xd0] sm:%s368]
                %430 = vst [vmem:[%s376 + $0x1a0] sm:%s368] %v429
                %v431 = vld [vmem:[%s375 + $0xd8] sm:%s368]
                %432 = vst [vmem:[%s376 + $0x1b0] sm:%s368] %v431
                %v433 = vld [vmem:[%s375 + $0xe0] sm:%s368]
                %434 = vst [vmem:[%s376 + $0x1c0] sm:%s368] %v433
                %v435 = vld [vmem:[%s375 + $0xe8] sm:%s368]
                %436 = vst [vmem:[%s376 + $0x1d0] sm:%s368] %v435
                %v437 = vld [vmem:[%s375 + $0xf0] sm:%s368]
                %438 = vst [vmem:[%s376 + $0x1e0] sm:%s368] %v437
                %v439 = vld [vmem:[%s375 + $0xf8] sm:%s368]
                %440 = vst [vmem:[%s376 + $0x1f0] sm:%s368] %v439
              $region45: #{_forward.3} parent=39 // loop_footer
                %s374 = sadd.s32 1, %s370
              $region46: #{_forward.3} parent=39 // loop_footer_branch
                %369 = sbr.rel target = $region42
              $region47: #{_forward.3} parent=39 // loop_exit
                _
            $region40: #{_forward.3} parent=31 // pred_fallthru
              _
          $region32: #{_forward.3} parent=27 // pred_fallthru
            _
          %517 = vnop
        $region28: #{_forward.3} parent=23 // pred_fallthru
          _
      $region24: #{_forward.3} parent=5 // pred_fallthru
        _
      %p518 = scmp.le.s32.totalorder 2, %s8
      // Predicated region
      $region63: #{_forward.3} parent=5 // pred_check
        %p519 = pneg %p518
      $region64: #{_forward.3} parent=5 // pred_check_branch
        %521 = sbr.rel (%p519) target = $region66
      $region65: #{_forward.3} parent=5 // pred_region
        %s522 = ssub.s32 %s8, 2
        // Predicated region
        $region67: #{_forward.3} parent=65 // pred_check
          %p523 = pneg %p77
        $region68: #{_forward.3} parent=65 // pred_check_branch
          %525 = sbr.rel (%p523) target = $region70
        $region69: #{_forward.3} parent=65 // pred_region
          %s526 = sand.u32 %s62, 1
          %s527 = sand.u32 %s62, 1
          %s528 = smul.addr %s527, 256
          %s529 = scalar_lea.vmem [#allocation2], %s528
        $region70: #{_forward.3} parent=65 // pred_fallthru
          _
      $region66: #{_forward.3} parent=5 // pred_fallthru
        _
    $region6: #{_forward.3} parent=1 // loop_footer
      %s12 = sadd.s32 1, %s8
    $region7: #{_forward.3} parent=1 // loop_footer_branch
      %7 = sbr.rel target = $region3
    $region8: #{_forward.3} parent=1 // loop_exit
      _

// kernel: _forward.2
$region0: #{_forward.2}
  #allocation0 [shape = 'u32[]', space=smem, size = 0x4, offset = 0x4, fixed_abs, tag = 'smem constant byte address 0x4 - core index']
  #allocation1 [shape = 'u32[144,128]{1,0:T(1,128)}', space=vmem, size = 0x12000, scoped, tag = 'internal scratch']
  #allocation2 [shape = 'f32[256,1]{1,0:T(8,128)}', space=vmem, size = 0x20000, scoped, tag = 'scratch operand']
  %s0 = inlined_call_operand.vmem [shape: f32[2,3,200], index: 0, kind: input, shape index: {}]
  %s1 = inlined_call_operand.vmem [shape: f32[64,3], index: 1, kind: input, shape index: {}]
  %s2 = inlined_call_operand.vmem [shape: f32[64,1], index: 2, kind: input, shape index: {}]
  %s3 = inlined_call_operand.vmem [shape: f32[128,64], index: 3, kind: input, shape index: {}]
  %s4 = inlined_call_operand.vmem [shape: f32[128,1], index: 4, kind: input, shape index: {}]
  %s5 = inlined_call_operand.vmem [shape: f32[256,128], index: 5, kind: input, shape index: {}]
  %s6 = inlined_call_operand.vmem [shape: f32[256,1], index: 6, kind: input, shape index: {}]
  %s7 = inlined_call_operand.vmem [shape: f32[2,320,200], index: 7, kind: output, shape index: {0}]
  %s8 = inlined_call_operand.vmem [shape: f32[2,256,1], index: 8, kind: output, shape index: {1}]
  %9 = xla_tuple %s7, %s8
  %s10 = sld [smem:[#allocation0]]
  $region115: #{_forward.2} parent=0
    _
  %s12 = ssub.s32 1, %s10
  %s13 = scalar_select 0, %s12, %s10
  $region1: #{_forward.2} parent=0
    #allocation3 [shape = 'u8[65536]{0}', space=vmem, size = 0x10000, scoped, tag = 'output window, operand 0']
    loop: start=0, step=1, limit=6
    $region2: #{_forward.2} parent=1 // loop_pre_header
      _
    $region3: #{_forward.2} parent=1 // loop_header
      %s15 = sphi 0, %s19
      %p16 = scmp.ge.s32.totalorder %s15, 6
      %s22 = sphi 0, %s34
      %s23 = sphi 0, %s30
      %s24 = sphi 0, %s22
      %s25 = sphi 0, %s23
      %s26 = sphi 0, %s24
      %s27 = sphi 0, %s25
      %s39 = sphi 0, %s41
      %s42 = sphi 0, %s39
      %s43 = sphi 0, %s42
      %s59 = sphi 0, %s43
      %s63 = sphi 0, %s63
      %s65 = sphi 0, %s63
      %s66 = sphi 0, %s65
      %s80 = sphi 0, %s66
      %s84 = sphi 0, %s84
      %s86 = sphi 0, %s84
      %s87 = sphi 0, %s86
      %s101 = sphi 0, %s87
      %s105 = sphi 0, %s105
      %s107 = sphi 0, %s105
      %s108 = sphi 0, %s107
      %s122 = sphi 0, %s108
      %s126 = sphi 0, %s126
      %s128 = sphi 0, %s126
      %s129 = sphi 0, %s128
      %s143 = sphi 0, %s129
      %s147 = sphi 0, %s147
      %s149 = sphi 0, %s147
      %s150 = sphi 0, %s149
      %s164 = sphi 0, %s150
      %s168 = sphi 0, %s168
      %s170 = sphi 0, %s168
      %s171 = sphi 0, %s170
      %s185 = sphi 0, %s171
      %s193 = sphi 0, %s195
      %s196 = sphi 0, %s193
      %s197 = sphi 0, %s196
      %s213 = sphi 0, %s197
      %s219 = sphi 0, %s221
      %s222 = sphi 0, %s219
      %s223 = sphi 0, %s222
      %s239 = sphi 0, %s223
    $region4: #{_forward.2} parent=1 // loop_header_branch
      %18 = sbr.rel (%p16) target = $region8
    $region5: #{_forward.2} parent=1 // loop_body
      %s20 = ssub.s32 %s15, 1
      %s21 = ssub.s32 %s15, 2
      %s28 = sadd.s32 1, %s23
      %p29 = scmp.ge.s32.totalorder %s28, 2
      %s30 = scalar_select %p29, 0, %s28
      %s31 = sadd.s32 1, %s22
      %s32 = scalar_select %p29, %s31, %s22
      %p33 = scmp.ge.s32.totalorder %s32, 2
      %s34 = scalar_select %p33, 0, %s32
      %s35 = ssub.s32 %s22, %s34
      %s36 = ssub.s32 %s23, %s30
      %s37 = sor.u32 %s35, %s36
      %p38 = scmp.eq.s32.totalorder %s37, 0
      %s40 = sadd.s32 %s39, 1
      %s41 = scalar_select %p38, %s39, %s40
      %p44 = pneg %p38
      %p45 = scmp.eq.s32.totalorder %s15, 3
      %p46 = por %p44, %p45
      %p47 = scmp.ne.s32.totalorder %s39, %s42
      %p48 = scmp.eq.s32.totalorder %s15, 0
      %p49 = por %p47, %p48
      %p50 = scmp.ne.s32.totalorder %s39, %s42
      %p51 = scmp.eq.s32.totalorder %s20, 3
      %p52 = por %p50, %p51
      %p53 = scmp.ne.s32.totalorder %s42, %s43
      %p54 = scmp.eq.s32.totalorder %s20, 0
      %p55 = por %p53, %p54
      %p56 = scmp.ne.s32.totalorder %s42, %s43
      %p57 = scmp.eq.s32.totalorder %s21, 3
      %p58 = por %p56, %p57
      %p60 = scmp.ne.s32.totalorder %s43, %s59
      %p61 = scmp.eq.s32.totalorder %s21, 0
      %p62 = por %p60, %p61
      %s64 = sadd.s32 %s63, 1
      %p67 = scmp.eq.s32.totalorder %s15, 3
      %p68 = scmp.ne.s32.totalorder %s63, %s65
      %p69 = scmp.eq.s32.totalorder %s15, 0
      %p70 = por %p68, %p69
      %p71 = scmp.ne.s32.totalorder %s63, %s65
      %p72 = scmp.eq.s32.totalorder %s20, 3
      %p73 = por %p71, %p72
      %p74 = scmp.ne.s32.totalorder %s65, %s66
      %p75 = scmp.eq.s32.totalorder %s20, 0
      %p76 = por %p74, %p75
      %p77 = scmp.ne.s32.totalorder %s65, %s66
      %p78 = scmp.eq.s32.totalorder %s21, 3
      %p79 = por %p77, %p78
      %p81 = scmp.ne.s32.totalorder %s66, %s80
      %p82 = scmp.eq.s32.totalorder %s21, 0
      %p83 = por %p81, %p82
      %s85 = sadd.s32 %s84, 1
      %p88 = scmp.eq.s32.totalorder %s15, 3
      %p89 = scmp.ne.s32.totalorder %s84, %s86
      %p90 = scmp.eq.s32.totalorder %s15, 0
      %p91 = por %p89, %p90
      %p92 = scmp.ne.s32.totalorder %s84, %s86
      %p93 = scmp.eq.s32.totalorder %s20, 3
      %p94 = por %p92, %p93
      %p95 = scmp.ne.s32.totalorder %s86, %s87
      %p96 = scmp.eq.s32.totalorder %s20, 0
      %p97 = por %p95, %p96
      %p98 = scmp.ne.s32.totalorder %s86, %s87
      %p99 = scmp.eq.s32.totalorder %s21, 3
      %p100 = por %p98, %p99
      %p102 = scmp.ne.s32.totalorder %s87, %s101
      %p103 = scmp.eq.s32.totalorder %s21, 0
      %p104 = por %p102, %p103
      %s106 = sadd.s32 %s105, 1
      %p109 = scmp.eq.s32.totalorder %s15, 3
      %p110 = scmp.ne.s32.totalorder %s105, %s107
      %p111 = scmp.eq.s32.totalorder %s15, 0
      %p112 = por %p110, %p111
      %p113 = scmp.ne.s32.totalorder %s105, %s107
      %p114 = scmp.eq.s32.totalorder %s20, 3
      %p115 = por %p113, %p114
      %p116 = scmp.ne.s32.totalorder %s107, %s108
      %p117 = scmp.eq.s32.totalorder %s20, 0
      %p118 = por %p116, %p117
      %p119 = scmp.ne.s32.totalorder %s107, %s108
      %p120 = scmp.eq.s32.totalorder %s21, 3
      %p121 = por %p119, %p120
      %p123 = scmp.ne.s32.totalorder %s108, %s122
      %p124 = scmp.eq.s32.totalorder %s21, 0
      %p125 = por %p123, %p124
      %s127 = sadd.s32 %s126, 1
      %p130 = scmp.eq.s32.totalorder %s15, 3
      %p131 = scmp.ne.s32.totalorder %s126, %s128
      %p132 = scmp.eq.s32.totalorder %s15, 0
      %p133 = por %p131, %p132
      %p134 = scmp.ne.s32.totalorder %s126, %s128
      %p135 = scmp.eq.s32.totalorder %s20, 3
      %p136 = por %p134, %p135
      %p137 = scmp.ne.s32.totalorder %s128, %s129
      %p138 = scmp.eq.s32.totalorder %s20, 0
      %p139 = por %p137, %p138
      %p140 = scmp.ne.s32.totalorder %s128, %s129
      %p141 = scmp.eq.s32.totalorder %s21, 3
      %p142 = por %p140, %p141
      %p144 = scmp.ne.s32.totalorder %s129, %s143
      %p145 = scmp.eq.s32.totalorder %s21, 0
      %p146 = por %p144, %p145
      %s148 = sadd.s32 %s147, 1
      %p151 = scmp.eq.s32.totalorder %s15, 3
      %p152 = scmp.ne.s32.totalorder %s147, %s149
      %p153 = scmp.eq.s32.totalorder %s15, 0
      %p154 = por %p152, %p153
      %p155 = scmp.ne.s32.totalorder %s147, %s149
      %p156 = scmp.eq.s32.totalorder %s20, 3
      %p157 = por %p155, %p156
      %p158 = scmp.ne.s32.totalorder %s149, %s150
      %p159 = scmp.eq.s32.totalorder %s20, 0
      %p160 = por %p158, %p159
      %p161 = scmp.ne.s32.totalorder %s149, %s150
      %p162 = scmp.eq.s32.totalorder %s21, 3
      %p163 = por %p161, %p162
      %p165 = scmp.ne.s32.totalorder %s150, %s164
      %p166 = scmp.eq.s32.totalorder %s21, 0
      %p167 = por %p165, %p166
      %s169 = sadd.s32 %s168, 1
      %p172 = scmp.eq.s32.totalorder %s15, 3
      %p173 = scmp.ne.s32.totalorder %s168, %s170
      %p174 = scmp.eq.s32.totalorder %s15, 0
      %p175 = por %p173, %p174
      %p176 = scmp.ne.s32.totalorder %s168, %s170
      %p177 = scmp.eq.s32.totalorder %s20, 3
      %p178 = por %p176, %p177
      %p179 = scmp.ne.s32.totalorder %s170, %s171
      %p180 = scmp.eq.s32.totalorder %s20, 0
      %p181 = por %p179, %p180
      %p182 = scmp.ne.s32.totalorder %s170, %s171
      %p183 = scmp.eq.s32.totalorder %s21, 3
      %p184 = por %p182, %p183
      %p186 = scmp.ne.s32.totalorder %s171, %s185
      %p187 = scmp.eq.s32.totalorder %s21, 0
      %p188 = por %p186, %p187
      %s189 = ssub.s32 %s22, %s34
      %s190 = ssub.s32 %s23, %s30
      %s191 = sor.u32 %s189, %s190
      %p192 = scmp.eq.s32.totalorder %s191, 0
      %s194 = sadd.s32 %s193, 1
      %s195 = scalar_select %p192, %s193, %s194
      %p198 = pneg %p192
      %p199 = scmp.eq.s32.totalorder %s15, 3
      %p200 = por %p198, %p199
      %p201 = scmp.ne.s32.totalorder %s193, %s196
      %p202 = scmp.eq.s32.totalorder %s15, 0
      %p203 = por %p201, %p202
      %p204 = scmp.ne.s32.totalorder %s193, %s196
      %p205 = scmp.eq.s32.totalorder %s20, 3
      %p206 = por %p204, %p205
      %p207 = scmp.ne.s32.totalorder %s196, %s197
      %p208 = scmp.eq.s32.totalorder %s20, 0
      %p209 = por %p207, %p208
      %p210 = scmp.ne.s32.totalorder %s196, %s197
      %p211 = scmp.eq.s32.totalorder %s21, 3
      %p212 = por %p210, %p211
      %p214 = scmp.ne.s32.totalorder %s197, %s213
      %p215 = scmp.eq.s32.totalorder %s21, 0
      %p216 = por %p214, %p215
      %s217 = ssub.s32 %s22, %s34
      %p218 = scmp.eq.s32.totalorder %s217, 0
      %s220 = sadd.s32 %s219, 1
      %s221 = scalar_select %p218, %s219, %s220
      %p224 = pneg %p218
      %p225 = scmp.eq.s32.totalorder %s15, 3
      %p226 = por %p224, %p225
      %p227 = scmp.ne.s32.totalorder %s219, %s222
      %p228 = scmp.eq.s32.totalorder %s15, 0
      %p229 = por %p227, %p228
      %p230 = scmp.ne.s32.totalorder %s219, %s222
      %p231 = scmp.eq.s32.totalorder %s20, 3
      %p232 = por %p230, %p231
      %p233 = scmp.ne.s32.totalorder %s222, %s223
      %p234 = scmp.eq.s32.totalorder %s20, 0
      %p235 = por %p233, %p234
      %p236 = scmp.ne.s32.totalorder %s222, %s223
      %p237 = scmp.eq.s32.totalorder %s21, 3
      %p238 = por %p236, %p237
      %p240 = scmp.ne.s32.totalorder %s223, %s239
      %p241 = scmp.eq.s32.totalorder %s21, 0
      %p242 = por %p240, %p241
      %p243 = scmp.le.s32.totalorder 1, %s15
      %p244 = scmp.lt.s32.totalorder %s15, 5
      %p245 = pnand %p243, %p244
      %p246 = pneg %p245
      // Predicated region
      $region9: #{_forward.2} parent=5 // pred_check
        _
      $region10: #{_forward.2} parent=5 // pred_check_branch
        %248 = sbr.rel (%p245) target = $region12
      $region11: #{_forward.2} parent=5 // pred_region
        %s249 = ssub.s32 %s15, 1
        // Predicated region
        $region13: #{_forward.2} parent=11 // pred_check
          %p250 = pneg %p76
        $region14: #{_forward.2} parent=11 // pred_check_branch
          %252 = sbr.rel (%p250) target = $region16
        $region15: #{_forward.2} parent=11 // pred_region
          _
        $region16: #{_forward.2} parent=11 // pred_fallthru
          _
        // Predicated region
        $region17: #{_forward.2} parent=11 // pred_check
          %p253 = pneg %p97
        $region18: #{_forward.2} parent=11 // pred_check_branch
          %255 = sbr.rel (%p253) target = $region20
        $region19: #{_forward.2} parent=11 // pred_region
          _
        $region20: #{_forward.2} parent=11 // pred_fallthru
          _
        // Predicated region
        $region21: #{_forward.2} parent=11 // pred_check
          %p256 = pneg %p118
        $region22: #{_forward.2} parent=11 // pred_check_branch
          %258 = sbr.rel (%p256) target = $region24
        $region23: #{_forward.2} parent=11 // pred_region
          _
        $region24: #{_forward.2} parent=11 // pred_fallthru
          _
        // Predicated region
        $region25: #{_forward.2} parent=11 // pred_check
          %p259 = pneg %p139
        $region26: #{_forward.2} parent=11 // pred_check_branch
          %261 = sbr.rel (%p259) target = $region28
        $region27: #{_forward.2} parent=11 // pred_region
          _
        $region28: #{_forward.2} parent=11 // pred_fallthru
          _
        // Predicated region
        $region29: #{_forward.2} parent=11 // pred_check
          %p262 = pneg %p160
        $region30: #{_forward.2} parent=11 // pred_check_branch
          %264 = sbr.rel (%p262) target = $region32
        $region31: #{_forward.2} parent=11 // pred_region
          _
        $region32: #{_forward.2} parent=11 // pred_fallthru
          _
        // Predicated region
        $region33: #{_forward.2} parent=11 // pred_check
          %p265 = pneg %p181
        $region34: #{_forward.2} parent=11 // pred_check_branch
          %267 = sbr.rel (%p265) target = $region36
        $region35: #{_forward.2} parent=11 // pred_region
          _
        $region36: #{_forward.2} parent=11 // pred_fallthru
          _
      $region12: #{_forward.2} parent=5 // pred_fallthru
        _
      %p268 = scmp.lt.s32.totalorder %s15, 4
      // Predicated region
      $region37: #{_forward.2} parent=5 // pred_check
        %p269 = pneg %p268
      $region38: #{_forward.2} parent=5 // pred_check_branch
        %271 = sbr.rel (%p269) target = $region40
      $region39: #{_forward.2} parent=5 // pred_region
        // Predicated region
        $region41: #{_forward.2} parent=39 // pred_check
          %p272 = pneg %p49
        $region42: #{_forward.2} parent=39 // pred_check_branch
          %274 = sbr.rel (%p272) target = $region44
        $region43: #{_forward.2} parent=39 // pred_region
          %p275 = scmp.lt.s32.totalorder %s22, 1
          %s276 = scalar_select %p275, %s22, 1
          %p277 = scmp.lt.s32.totalorder %s23, 1
          %s278 = scalar_select %p277, %s23, 1
          %s279 = smul.addr %s276, 2
          %s280 = sadd.s32 %s278, %s279
          %s281 = smul.addr %s280, 4
          %s282 = scalar_lea.vmem %s0, %s281
        $region44: #{_forward.2} parent=39 // pred_fallthru
          _
      $region40: #{_forward.2} parent=5 // pred_fallthru
        _
      %p283 = scmp.le.s32.totalorder 1, %s15
      %p284 = scmp.lt.s32.totalorder %s15, 5
      %p285 = pnand %p283, %p284
      %p286 = pneg %p285
      // Predicated region
      $region45: #{_forward.2} parent=5 // pred_check
        _
      $region46: #{_forward.2} parent=5 // pred_check_branch
        %288 = sbr.rel (%p285) target = $region48
      $region47: #{_forward.2} parent=5 // pred_region
        %s289 = ssub.s32 %s15, 1
        %p290 = scmp.lt.s32.totalorder %s24, 1
        %s291 = scalar_select %p290, %s24, 1
        %p292 = scmp.lt.s32.totalorder %s25, 1
        %s293 = scalar_select %p292, %s25, 1
        %s294 = smul.addr %s291, 2
        %s295 = sadd.s32 %s293, %s294
        %s296 = smul.addr %s295, 4
        %s297 = scalar_lea.vmem %s0, %s296
        %p298 = pneg %p55
        %p299 = pneg %p52
        %p300 = pneg %p76
        %p301 = pneg %p73
        %p302 = pneg %p97
        %p303 = pneg %p94
        %p304 = pneg %p118
        %p305 = pneg %p115
        %p306 = pneg %p139
        %p307 = pneg %p136
        %p308 = pneg %p160
        %p309 = pneg %p157
        %p310 = pneg %p181
        %p311 = pneg %p178
        %p312 = pneg %p209
        %p313 = pneg %p206
        %s314 = sand.u32 %s196, 1
        %s315 = sand.u32 %s196, 1
        %s316 = smul.addr %s315, 64
        %s317 = scalar_lea.vmem [#allocation3], %s316
        %p318 = pneg %p235
        %p319 = pneg %p232
        %p320 = scmp.lt.s32.totalorder %s24, 1
        %s321 = scalar_select %p320, %s24, 1
        %s322 = smul.addr %s321, 32
        %s323 = smul.addr %s322, 8
        %s324 = scalar_lea.vmem %s8, %s323
        %p325 = scmp.lt.s32.totalorder %s24, 1
        %s326 = scalar_select %p325, %s24, 1
        %p327 = scmp.lt.s32.totalorder %s25, 1
        %s328 = scalar_select %p327, %s25, 1
        %s329 = smul.addr %s326, 2
        %s330 = sadd.s32 %s328, %s329
        %s331 = smul.addr %s330, 4
        %s332 = scalar_lea.vmem %s0, %s331
        %p333 = scmp.lt.s32.totalorder %s24, 1
        %s334 = scalar_select %p333, %s24, 1
        %s335 = smul.addr %s334, 32
        %s336 = smul.addr %s335, 8
        %s337 = scalar_lea.vmem %s8, %s336
        %v338 = vld [vmem:[%s332] sm:$0x7]
        %v339 = vld [vmem:[%s1] sm:$0xff]
        %v340 = vld [vmem:[%s1 + $0x8] sm:$0xff]
        %v341 = vld [vmem:[%s1 + $0x10] sm:$0xff]
        %v342 = vld [vmem:[%s1 + $0x18] sm:$0xff]
        %v343 = vld [vmem:[%s1 + $0x20] sm:$0xff]
        %v344 = vld [vmem:[%s1 + $0x28] sm:$0xff]
        %v345 = vld [vmem:[%s1 + $0x30] sm:$0xff]
        %v346 = vld [vmem:[%s1 + $0x38] sm:$0xff]
        %v347 = vld [vmem:[%s2] sm:$0xff]
        %v348 = vld [vmem:[%s2 + $0x8] sm:$0xff]
        %v349 = vld [vmem:[%s2 + $0x10] sm:$0xff]
        %v350 = vld [vmem:[%s2 + $0x18] sm:$0xff]
        %v351 = vld [vmem:[%s2 + $0x20] sm:$0xff]
        %v352 = vld [vmem:[%s2 + $0x28] sm:$0xff]
        %v353 = vld [vmem:[%s2 + $0x30] sm:$0xff]
        %v354 = vld [vmem:[%s2 + $0x38] sm:$0xff]
        %356 = vset.pattern.permute.xlu0 0
        %357 = vperm.xlu0 %356, %v347
        %v358 = vpop.permute.xlu0 %357
        %361 = vset.pattern.permute.xlu0 0
        %362 = vperm.xlu0 %361, %v348
        %v363 = vpop.permute.xlu0 %362
        %366 = vset.pattern.permute.xlu0 0
        %367 = vperm.xlu0 %366, %v349
        %v368 = vpop.permute.xlu0 %367
        %371 = vset.pattern.permute.xlu0 0
        %372 = vperm.xlu0 %371, %v350
        %v373 = vpop.permute.xlu0 %372
        %376 = vset.pattern.permute.xlu0 0
        %377 = vperm.xlu0 %376, %v351
        %v378 = vpop.permute.xlu0 %377
        %381 = vset.pattern.permute.xlu0 0
        %382 = vperm.xlu0 %381, %v352
        %v383 = vpop.permute.xlu0 %382
        %386 = vset.pattern.permute.xlu0 0
        %387 = vperm.xlu0 %386, %v353
        %v388 = vpop.permute.xlu0 %387
        %391 = vset.pattern.permute.xlu0 0
        %392 = vperm.xlu0 %391, %v354
        %v393 = vpop.permute.xlu0 %392
        %vm395 = vcmask 23552
        %v397 = vsel %vm395, %v339, 0
        %v400 = vsel %vm395, %v340, 0
        %v403 = vsel %vm395, %v341, 0
        %v406 = vsel %vm395, %v342, 0
        %v409 = vsel %vm395, %v343, 0
        %v412 = vsel %vm395, %v344, 0
        %v415 = vsel %vm395, %v345, 0
        %v418 = vsel %vm395, %v346, 0
        %vm420 = vcmask 1042432
        %v422 = vsel %vm420, %v338, 0
        %424 = vmatprep.subr.mxu0 0.0
        %425 = vmatpush1.msra.mxu0 0.0
        %426 = vmatprep.subr.mxu0 0.0
        %427 = vmatpush1.msra.mxu0 0.0
        %428 = vmatprep.subr.mxu0 0.0
        %429 = vmatpush1.msra.mxu0 0.0
        %430 = vmatprep.subr.mxu0 0.0
        %431 = vmatpush1.msra.mxu0 0.0
        %432 = vmatprep.subr.mxu0 0.0
        %433 = vmatpush1.msra.mxu0 0.0
        %434 = vmatprep.subr.mxu0 0.0
        %435 = vmatpush1.msra.mxu0 0.0
        %436 = vmatprep.subr.mxu0 0.0
        %437 = vmatpush1.msra.mxu0 0.0
        %438 = vmatprep.subr.mxu0 0.0
        %439 = vmatpush1.msra.mxu0 0.0
        %440 = vmatprep.subr.mxu0 0.0
        %441 = vmatpush1.msra.mxu0 0.0
        %442 = vmatprep.subr.mxu0 0.0
        %443 = vmatpush1.msra.mxu0 0.0
        %444 = vmatprep.subr.mxu0 0.0
        %445 = vmatpush1.msra.mxu0 0.0
        %446 = vmatprep.subr.mxu0 0.0
        %447 = vmatpush1.msra.mxu0 0.0
        %448 = vmatprep.subr.mxu0 0.0
        %449 = vmatpush1.msra.mxu0 0.0
        %450 = vmatprep.subr.mxu0 0.0
        %451 = vmatpush1.msra.mxu0 0.0
        %452 = vmatprep.subr.mxu0 0.0
        %453 = vmatpush1.msra.mxu0 0.0
        %454 = vmatprep.subr.mxu0 0.0
        %455 = vmatpush1.msra.mxu0 %v422
        %456 = vmatprep.subr.mxu0 0.0
        %457 = vmatpush2.msra.mxu0 0.0
        %458 = vmatprep.subr.mxu0 0.0
        %459 = vmatpush2.msra.mxu0 0.0
        %460 = vmatprep.subr.mxu0 0.0
        %461 = vmatpush2.msra.mxu0 0.0
        %462 = vmatprep.subr.mxu0 0.0
        %463 = vmatpush2.msra.mxu0 0.0
        %464 = vmatprep.subr.mxu0 0.0
        %465 = vmatpush2.msra.mxu0 0.0
        %466 = vmatprep.subr.mxu0 0.0
        %467 = vmatpush2.msra.mxu0 0.0
        %468 = vmatprep.subr.mxu0 0.0
        %469 = vmatpush2.msra.mxu0 0.0
        %470 = vmatprep.subr.mxu0 0.0
        %471 = vmatpush2.msra.mxu0 0.0
        %472 = vmatprep.subr.mxu0 0.0
        %473 = vmatpush2.msra.mxu0 0.0
        %474 = vmatprep.subr.mxu0 0.0
        %475 = vmatpush2.msra.mxu0 0.0
        %476 = vmatprep.subr.mxu0 0.0
        %477 = vmatpush2.msra.mxu0 0.0
        %478 = vmatprep.subr.mxu0 0.0
        %479 = vmatpush2.msra.mxu0 0.0
        %480 = vmatprep.subr.mxu0 0.0
        %481 = vmatpush2.msra.mxu0 0.0
        %482 = vmatprep.subr.mxu0 0.0
        %483 = vmatpush2.msra.mxu0 0.0
        %484 = vmatprep.subr.mxu0 0.0
        %485 = vmatpush2.msra.mxu0 0.0
        %486 = vmatprep.subr.mxu0 0.0
        %487 = vmatpush2.msra.mxu0 0.0
        %488 = vmatprep.mubr.f32.mxu0 0.0
        %489 = vmatmul.mubr.f32.gmra.mxu0 %v397
        %v490 = vpop.f32.mrf.mxu0
        %v491 = vadd.f32 %v358, %v490
        %v492 = vpop.f32.mrf.mxu0
        %493 = vmatprep.mubr.f32.mxu0 0.0
        %494 = vmatmul.mubr.f32.gmra.mxu0 %v400
        %v495 = vpop.f32.mrf.mxu0
        %v496 = vadd.f32 %v363, %v495
        %v497 = vpop.f32.mrf.mxu0
        %498 = vmatprep.mubr.f32.mxu0 0.0
        %499 = vmatmul.mubr.f32.gmra.mxu0 %v403
        %v500 = vpop.f32.mrf.mxu0
        %v501 = vadd.f32 %v368, %v500
        %v502 = vpop.f32.mrf.mxu0
        %503 = vmatprep.mubr.f32.mxu0 0.0
        %504 = vmatmul.mubr.f32.gmra.mxu0 %v406
        %v505 = vpop.f32.mrf.mxu0
        %v506 = vadd.f32 %v373, %v505
        %v507 = vpop.f32.mrf.mxu0
        %508 = vmatprep.mubr.f32.mxu0 0.0
        %509 = vmatmul.mubr.f32.gmra.mxu0 %v409
        %v510 = vpop.f32.mrf.mxu0
        %v511 = vadd.f32 %v378, %v510
        %v512 = vpop.f32.mrf.mxu0
        %513 = vmatprep.mubr.f32.mxu0 0.0
        %514 = vmatmul.mubr.f32.gmra.mxu0 %v412
        %v515 = vpop.f32.mrf.mxu0
        %v516 = vadd.f32 %v383, %v515
        %v517 = vpop.f32.mrf.mxu0
        %518 = vmatprep.mubr.f32.mxu0 0.0
        %519 = vmatmul.mubr.f32.gmra.mxu0 %v415
        %v520 = vpop.f32.mrf.mxu0
        %v521 = vadd.f32 %v388, %v520
        %v522 = vpop.f32.mrf.mxu0
        %523 = vmatprep.mubr.f32.mxu0 0.0
        %524 = vmatmul.mubr.f32.gmra.mxu0 %v418
        %v525 = vpop.f32.mrf.mxu0
        %v526 = vadd.f32 %v393, %v525
        %v527 = vpop.f32.mrf.mxu0
        %528 = vdwg.mxu0
        %v529 = vmax.f32 %v491, 0.0
        %v530 = vmax.f32 %v496, 0.0
        %v531 = vmax.f32 %v501, 0.0
        %v532 = vmax.f32 %v506, 0.0
        %v533 = vmax.f32 %v511, 0.0
        %v534 = vmax.f32 %v516, 0.0
        %v535 = vmax.f32 %v521, 0.0
        %v536 = vmax.f32 %v526, 0.0
        %537 = vst [vmem:[%s317] sm:$0xff] %v529
        %538 = vst [vmem:[%s317 + $0x8] sm:$0xff] %v530
        %539 = vst [vmem:[%s317 + $0x10] sm:$0xff] %v531
        %540 = vst [vmem:[%s317 + $0x18] sm:$0xff] %v532
        %541 = vst [vmem:[%s317 + $0x20] sm:$0xff] %v533
        %542 = vst [vmem:[%s317 + $0x28] sm:$0xff] %v534
        %543 = vst [vmem:[%s317 + $0x30] sm:$0xff] %v535
        %544 = vst [vmem:[%s317 + $0x38] sm:$0xff] %v536
        %v545 = vld [vmem:[%s3] sm:$0xff]
        %v546 = vld [vmem:[%s3 + $0x8] sm:$0xff]
        %v547 = vld [vmem:[%s3 + $0x10] sm:$0xff]
        %v548 = vld [vmem:[%s3 + $0x18] sm:$0xff]
        %v549 = vld [vmem:[%s3 + $0x20] sm:$0xff]
        %v550 = vld [vmem:[%s3 + $0x28] sm:$0xff]
        %v551 = vld [vmem:[%s3 + $0x30] sm:$0xff]
        %v552 = vld [vmem:[%s3 + $0x38] sm:$0xff]
        %v553 = vld [vmem:[%s3 + $0x40] sm:$0xff]
        %v554 = vld [vmem:[%s3 + $0x48] sm:$0xff]
        %v555 = vld [vmem:[%s3 + $0x50] sm:$0xff]
        %v556 = vld [vmem:[%s3 + $0x58] sm:$0xff]
        %v557 = vld [vmem:[%s3 + $0x60] sm:$0xff]
        %v558 = vld [vmem:[%s3 + $0x68] sm:$0xff]
        %v559 = vld [vmem:[%s3 + $0x70] sm:$0xff]
        %v560 = vld [vmem:[%s3 + $0x78] sm:$0xff]
        %v561 = vld [vmem:[%s4] sm:$0xff]
        %v562 = vld [vmem:[%s4 + $0x8] sm:$0xff]
        %v563 = vld [vmem:[%s4 + $0x10] sm:$0xff]
        %v564 = vld [vmem:[%s4 + $0x18] sm:$0xff]
        %v565 = vld [vmem:[%s4 + $0x20] sm:$0xff]
        %v566 = vld [vmem:[%s4 + $0x28] sm:$0xff]
        %v567 = vld [vmem:[%s4 + $0x30] sm:$0xff]
        %v568 = vld [vmem:[%s4 + $0x38] sm:$0xff]
        %v569 = vld [vmem:[%s4 + $0x40] sm:$0xff]
        %v570 = vld [vmem:[%s4 + $0x48] sm:$0xff]
        %v571 = vld [vmem:[%s4 + $0x50] sm:$0xff]
        %v572 = vld [vmem:[%s4 + $0x58] sm:$0xff]
        %v573 = vld [vmem:[%s4 + $0x60] sm:$0xff]
        %v574 = vld [vmem:[%s4 + $0x68] sm:$0xff]
        %v575 = vld [vmem:[%s4 + $0x70] sm:$0xff]
        %v576 = vld [vmem:[%s4 + $0x78] sm:$0xff]
        %578 = vset.pattern.permute.xlu0 0
        %579 = vperm.xlu0 %578, %v561
        %v580 = vpop.permute.xlu0 %579
        %583 = vset.pattern.permute.xlu0 0
        %584 = vperm.xlu0 %583, %v562
        %v585 = vpop.permute.xlu0 %584
        %588 = vset.pattern.permute.xlu0 0
        %589 = vperm.xlu0 %588, %v563
        %v590 = vpop.permute.xlu0 %589
        %593 = vset.pattern.permute.xlu0 0
        %594 = vperm.xlu0 %593, %v564
        %v595 = vpop.permute.xlu0 %594
        %598 = vset.pattern.permute.xlu0 0
        %599 = vperm.xlu0 %598, %v565
        %v600 = vpop.permute.xlu0 %599
        %603 = vset.pattern.permute.xlu0 0
        %604 = vperm.xlu0 %603, %v566
        %v605 = vpop.permute.xlu0 %604
        %608 = vset.pattern.permute.xlu0 0
        %609 = vperm.xlu0 %608, %v567
        %v610 = vpop.permute.xlu0 %609
        %613 = vset.pattern.permute.xlu0 0
        %614 = vperm.xlu0 %613, %v568
        %v615 = vpop.permute.xlu0 %614
        %618 = vset.pattern.permute.xlu0 0
        %619 = vperm.xlu0 %618, %v569
        %v620 = vpop.permute.xlu0 %619
        %623 = vset.pattern.permute.xlu0 0
        %624 = vperm.xlu0 %623, %v570
        %v625 = vpop.permute.xlu0 %624
        %628 = vset.pattern.permute.xlu0 0
        %629 = vperm.xlu0 %628, %v571
        %v630 = vpop.permute.xlu0 %629
        %633 = vset.pattern.permute.xlu0 0
        %634 = vperm.xlu0 %633, %v572
        %v635 = vpop.permute.xlu0 %634
        %638 = vset.pattern.permute.xlu0 0
        %639 = vperm.xlu0 %638, %v573
        %v640 = vpop.permute.xlu0 %639
        %643 = vset.pattern.permute.xlu0 0
        %644 = vperm.xlu0 %643, %v574
        %v645 = vpop.permute.xlu0 %644
        %648 = vset.pattern.permute.xlu0 0
        %649 = vperm.xlu0 %648, %v575
        %v650 = vpop.permute.xlu0 %649
        %653 = vset.pattern.permute.xlu0 0
        %654 = vperm.xlu0 %653, %v576
        %v655 = vpop.permute.xlu0 %654
        %vm657 = vcmask 523264
        %v659 = vsel %vm657, %v545, 0
        %v662 = vsel %vm657, %v546, 0
        %v665 = vsel %vm657, %v547, 0
        %v668 = vsel %vm657, %v548, 0
        %v671 = vsel %vm657, %v549, 0
        %v674 = vsel %vm657, %v550, 0
        %v677 = vsel %vm657, %v551, 0
        %v680 = vsel %vm657, %v552, 0
        %v683 = vsel %vm657, %v553, 0
        %v686 = vsel %vm657, %v554, 0
        %v689 = vsel %vm657, %v555, 0
        %v692 = vsel %vm657, %v556, 0
        %v695 = vsel %vm657, %v557, 0
        %v698 = vsel %vm657, %v558, 0
        %v701 = vsel %vm657, %v559, 0
        %v704 = vsel %vm657, %v560, 0
        %706 = vmatprep.subr.mxu0 0.0
        %707 = vmatpush1.msra.mxu0 0.0
        %708 = vmatprep.subr.mxu0 0.0
        %709 = vmatpush1.msra.mxu0 0.0
        %710 = vmatprep.subr.mxu0 0.0
        %711 = vmatpush1.msra.mxu0 0.0
        %712 = vmatprep.subr.mxu0 0.0
        %713 = vmatpush1.msra.mxu0 0.0
        %714 = vmatprep.subr.mxu0 0.0
        %715 = vmatpush1.msra.mxu0 0.0
        %716 = vmatprep.subr.mxu0 0.0
        %717 = vmatpush1.msra.mxu0 0.0
        %718 = vmatprep.subr.mxu0 0.0
        %719 = vmatpush1.msra.mxu0 0.0
        %720 = vmatprep.subr.mxu0 0.0
        %721 = vmatpush1.msra.mxu0 0.0
        %722 = vmatprep.subr.mxu0 0.0
        %723 = vmatpush1.msra.mxu0 %v536
        %724 = vmatprep.subr.mxu0 0.0
        %725 = vmatpush1.msra.mxu0 %v535
        %726 = vmatprep.subr.mxu0 0.0
        %727 = vmatpush1.msra.mxu0 %v534
        %728 = vmatprep.subr.mxu0 0.0
        %729 = vmatpush1.msra.mxu0 %v533
        %730 = vmatprep.subr.mxu0 0.0
        %731 = vmatpush1.msra.mxu0 %v532
        %732 = vmatprep.subr.mxu0 0.0
        %733 = vmatpush1.msra.mxu0 %v531
        %734 = vmatprep.subr.mxu0 0.0
        %735 = vmatpush1.msra.mxu0 %v530
        %736 = vmatprep.subr.mxu0 0.0
        %737 = vmatpush1.msra.mxu0 %v529
        %738 = vmatprep.subr.mxu0 0.0
        %739 = vmatpush2.msra.mxu0 0.0
        %740 = vmatprep.subr.mxu0 0.0
        %741 = vmatpush2.msra.mxu0 0.0
        %742 = vmatprep.subr.mxu0 0.0
        %743 = vmatpush2.msra.mxu0 0.0
        %744 = vmatprep.subr.mxu0 0.0
        %745 = vmatpush2.msra.mxu0 0.0
        %746 = vmatprep.subr.mxu0 0.0
        %747 = vmatpush2.msra.mxu0 0.0
        %748 = vmatprep.subr.mxu0 0.0
        %749 = vmatpush2.msra.mxu0 0.0
        %750 = vmatprep.subr.mxu0 0.0
        %751 = vmatpush2.msra.mxu0 0.0
        %752 = vmatprep.subr.mxu0 0.0
        %753 = vmatpush2.msra.mxu0 0.0
        %754 = vmatprep.subr.mxu0 0.0
        %755 = vmatpush2.msra.mxu0 0.0
        %756 = vmatprep.subr.mxu0 0.0
        %757 = vmatpush2.msra.mxu0 0.0
        %758 = vmatprep.subr.mxu0 0.0
        %759 = vmatpush2.msra.mxu0 0.0
        %760 = vmatprep.subr.mxu0 0.0
        %761 = vmatpush2.msra.mxu0 0.0
        %762 = vmatprep.subr.mxu0 0.0
        %763 = vmatpush2.msra.mxu0 0.0
        %764 = vmatprep.subr.mxu0 0.0
        %765 = vmatpush2.msra.mxu0 0.0
        %766 = vmatprep.subr.mxu0 0.0
        %767 = vmatpush2.msra.mxu0 0.0
        %768 = vmatprep.subr.mxu0 0.0
        %769 = vmatpush2.msra.mxu0 0.0
        %770 = vmatprep.mubr.f32.mxu0 0.0
        %771 = vmatmul.mubr.f32.gmra.mxu0 %v659
        %v772 = vpop.f32.mrf.mxu0
        %v773 = vadd.f32 %v580, %v772
        %v774 = vpop.f32.mrf.mxu0
        %775 = vmatprep.mubr.f32.mxu0 0.0
        %776 = vmatmul.mubr.f32.gmra.mxu0 %v662
        %v777 = vpop.f32.mrf.mxu0
        %v778 = vadd.f32 %v585, %v777
        %v779 = vpop.f32.mrf.mxu0
        %780 = vmatprep.mubr.f32.mxu0 0.0
        %781 = vmatmul.mubr.f32.gmra.mxu0 %v665
        %v782 = vpop.f32.mrf.mxu0
        %v783 = vadd.f32 %v590, %v782
        %v784 = vpop.f32.mrf.mxu0
        %785 = vmatprep.mubr.f32.mxu0 0.0
        %786 = vmatmul.mubr.f32.gmra.mxu0 %v668
        %v787 = vpop.f32.mrf.mxu0
        %v788 = vadd.f32 %v595, %v787
        %v789 = vpop.f32.mrf.mxu0
        %790 = vmatprep.mubr.f32.mxu0 0.0
        %791 = vmatmul.mubr.f32.gmra.mxu0 %v671
        %v792 = vpop.f32.mrf.mxu0
        %v793 = vadd.f32 %v600, %v792
        %v794 = vpop.f32.mrf.mxu0
        %795 = vmatprep.mubr.f32.mxu0 0.0
        %796 = vmatmul.mubr.f32.gmra.mxu0 %v674
        %v797 = vpop.f32.mrf.mxu0
        %v798 = vadd.f32 %v605, %v797
        %v799 = vpop.f32.mrf.mxu0
        %800 = vmatprep.mubr.f32.mxu0 0.0
        %801 = vmatmul.mubr.f32.gmra.mxu0 %v677
        %v802 = vpop.f32.mrf.mxu0
        %v803 = vadd.f32 %v610, %v802
        %v804 = vpop.f32.mrf.mxu0
        %805 = vmatprep.mubr.f32.mxu0 0.0
        %806 = vmatmul.mubr.f32.gmra.mxu0 %v680
        %v807 = vpop.f32.mrf.mxu0
        %v808 = vadd.f32 %v615, %v807
        %v809 = vpop.f32.mrf.mxu0
        %810 = vmatprep.mubr.f32.mxu0 0.0
        %811 = vmatmul.mubr.f32.gmra.mxu0 %v683
        %v812 = vpop.f32.mrf.mxu0
        %v813 = vadd.f32 %v620, %v812
        %v814 = vpop.f32.mrf.mxu0
        %815 = vmatprep.mubr.f32.mxu0 0.0
        %816 = vmatmul.mubr.f32.gmra.mxu0 %v686
        %v817 = vpop.f32.mrf.mxu0
        %v818 = vadd.f32 %v625, %v817
        %v819 = vpop.f32.mrf.mxu0
        %820 = vmatprep.mubr.f32.mxu0 0.0
        %821 = vmatmul.mubr.f32.gmra.mxu0 %v689
        %v822 = vpop.f32.mrf.mxu0
        %v823 = vadd.f32 %v630, %v822
        %v824 = vpop.f32.mrf.mxu0
        %825 = vmatprep.mubr.f32.mxu0 0.0
        %826 = vmatmul.mubr.f32.gmra.mxu0 %v692
        %v827 = vpop.f32.mrf.mxu0
        %v828 = vadd.f32 %v635, %v827
        %v829 = vpop.f32.mrf.mxu0
        %830 = vmatprep.mubr.f32.mxu0 0.0
        %831 = vmatmul.mubr.f32.gmra.mxu0 %v695
        %v832 = vpop.f32.mrf.mxu0
        %v833 = vadd.f32 %v640, %v832
        %v834 = vpop.f32.mrf.mxu0
        %835 = vmatprep.mubr.f32.mxu0 0.0
        %836 = vmatmul.mubr.f32.gmra.mxu0 %v698
        %v837 = vpop.f32.mrf.mxu0
        %v838 = vadd.f32 %v645, %v837
        %v839 = vpop.f32.mrf.mxu0
        %840 = vmatprep.mubr.f32.mxu0 0.0
        %841 = vmatmul.mubr.f32.gmra.mxu0 %v701
        %v842 = vpop.f32.mrf.mxu0
        %v843 = vadd.f32 %v650, %v842
        %v844 = vpop.f32.mrf.mxu0
        %845 = vmatprep.mubr.f32.mxu0 0.0
        %846 = vmatmul.mubr.f32.gmra.mxu0 %v704
        %v847 = vpop.f32.mrf.mxu0
        %v848 = vadd.f32 %v655, %v847
        %v849 = vpop.f32.mrf.mxu0
        %850 = vdwg.mxu0
        %v851 = vmax.f32 %v773, 0.0
        %v852 = vmax.f32 %v778, 0.0
        %v853 = vmax.f32 %v783, 0.0
        %v854 = vmax.f32 %v788, 0.0
        %v855 = vmax.f32 %v793, 0.0
        %v856 = vmax.f32 %v798, 0.0
        %v857 = vmax.f32 %v803, 0.0
        %v858 = vmax.f32 %v808, 0.0
        %v859 = vmax.f32 %v813, 0.0
        %v860 = vmax.f32 %v818, 0.0
        %v861 = vmax.f32 %v823, 0.0
        %v862 = vmax.f32 %v828, 0.0
        %v863 = vmax.f32 %v833, 0.0
        %v864 = vmax.f32 %v838, 0.0
        %v865 = vmax.f32 %v843, 0.0
        %v866 = vmax.f32 %v848, 0.0
        %v867 = vld [vmem:[%s5] sm:$0xff]
        %v868 = vld [vmem:[%s5 + $0x8] sm:$0xff]
        %v869 = vld [vmem:[%s5 + $0x10] sm:$0xff]
        %v870 = vld [vmem:[%s5 + $0x18] sm:$0xff]
        %v871 = vld [vmem:[%s5 + $0x20] sm:$0xff]
        %v872 = vld [vmem:[%s5 + $0x28] sm:$0xff]
        %v873 = vld [vmem:[%s5 + $0x30] sm:$0xff]
        %v874 = vld [vmem:[%s5 + $0x38] sm:$0xff]
        %v875 = vld [vmem:[%s5 + $0x40] sm:$0xff]
        %v876 = vld [vmem:[%s5 + $0x48] sm:$0xff]
        %v877 = vld [vmem:[%s5 + $0x50] sm:$0xff]
        %v878 = vld [vmem:[%s5 + $0x58] sm:$0xff]
        %v879 = vld [vmem:[%s5 + $0x60] sm:$0xff]
        %v880 = vld [vmem:[%s5 + $0x68] sm:$0xff]
        %v881 = vld [vmem:[%s5 + $0x70] sm:$0xff]
        %v882 = vld [vmem:[%s5 + $0x78] sm:$0xff]
        %v883 = vld [vmem:[%s5 + $0x80] sm:$0xff]
        %v884 = vld [vmem:[%s5 + $0x88] sm:$0xff]
        %v885 = vld [vmem:[%s5 + $0x90] sm:$0xff]
        %v886 = vld [vmem:[%s5 + $0x98] sm:$0xff]
        %v887 = vld [vmem:[%s5 + $0xa0] sm:$0xff]
        %v888 = vld [vmem:[%s5 + $0xa8] sm:$0xff]
        %v889 = vld [vmem:[%s5 + $0xb0] sm:$0xff]
        %v890 = vld [vmem:[%s5 + $0xb8] sm:$0xff]
        %v891 = vld [vmem:[%s5 + $0xc0] sm:$0xff]
        %v892 = vld [vmem:[%s5 + $0xc8] sm:$0xff]
        %v893 = vld [vmem:[%s5 + $0xd0] sm:$0xff]
        %v894 = vld [vmem:[%s5 + $0xd8] sm:$0xff]
        %v895 = vld [vmem:[%s5 + $0xe0] sm:$0xff]
        %v896 = vld [vmem:[%s5 + $0xe8] sm:$0xff]
        %v897 = vld [vmem:[%s5 + $0xf0] sm:$0xff]
        %v898 = vld [vmem:[%s5 + $0xf8] sm:$0xff]
        %v899 = vld [vmem:[%s6] sm:$0xff]
        %v900 = vld [vmem:[%s6 + $0x8] sm:$0xff]
        %v901 = vld [vmem:[%s6 + $0x10] sm:$0xff]
        %v902 = vld [vmem:[%s6 + $0x18] sm:$0xff]
        %v903 = vld [vmem:[%s6 + $0x20] sm:$0xff]
        %v904 = vld [vmem:[%s6 + $0x28] sm:$0xff]
        %v905 = vld [vmem:[%s6 + $0x30] sm:$0xff]
        %v906 = vld [vmem:[%s6 + $0x38] sm:$0xff]
        %v907 = vld [vmem:[%s6 + $0x40] sm:$0xff]
        %v908 = vld [vmem:[%s6 + $0x48] sm:$0xff]
        %v909 = vld [vmem:[%s6 + $0x50] sm:$0xff]
        %v910 = vld [vmem:[%s6 + $0x58] sm:$0xff]
        %v911 = vld [vmem:[%s6 + $0x60] sm:$0xff]
        %v912 = vld [vmem:[%s6 + $0x68] sm:$0xff]
        %v913 = vld [vmem:[%s6 + $0x70] sm:$0xff]
        %v914 = vld [vmem:[%s6 + $0x78] sm:$0xff]
        %v915 = vld [vmem:[%s6 + $0x80] sm:$0xff]
        %v916 = vld [vmem:[%s6 + $0x88] sm:$0xff]
        %v917 = vld [vmem:[%s6 + $0x90] sm:$0xff]
        %v918 = vld [vmem:[%s6 + $0x98] sm:$0xff]
        %v919 = vld [vmem:[%s6 + $0xa0] sm:$0xff]
        %v920 = vld [vmem:[%s6 + $0xa8] sm:$0xff]
        %v921 = vld [vmem:[%s6 + $0xb0] sm:$0xff]
        %v922 = vld [vmem:[%s6 + $0xb8] sm:$0xff]
        %v923 = vld [vmem:[%s6 + $0xc0] sm:$0xff]
        %v924 = vld [vmem:[%s6 + $0xc8] sm:$0xff]
        %v925 = vld [vmem:[%s6 + $0xd0] sm:$0xff]
        %v926 = vld [vmem:[%s6 + $0xd8] sm:$0xff]
        %v927 = vld [vmem:[%s6 + $0xe0] sm:$0xff]
        %v928 = vld [vmem:[%s6 + $0xe8] sm:$0xff]
        %v929 = vld [vmem:[%s6 + $0xf0] sm:$0xff]
        %v930 = vld [vmem:[%s6 + $0xf8] sm:$0xff]
        %932 = vset.pattern.permute.xlu0 0
        %933 = vperm.xlu0 %932, %v899
        %v934 = vpop.permute.xlu0 %933
        %937 = vset.pattern.permute.xlu0 0
        %938 = vperm.xlu0 %937, %v900
        %v939 = vpop.permute.xlu0 %938
        %942 = vset.pattern.permute.xlu0 0
        %943 = vperm.xlu0 %942, %v901
        %v944 = vpop.permute.xlu0 %943
        %947 = vset.pattern.permute.xlu0 0
        %948 = vperm.xlu0 %947, %v902
        %v949 = vpop.permute.xlu0 %948
        %952 = vset.pattern.permute.xlu0 0
        %953 = vperm.xlu0 %952, %v903
        %v954 = vpop.permute.xlu0 %953
        %957 = vset.pattern.permute.xlu0 0
        %958 = vperm.xlu0 %957, %v904
        %v959 = vpop.permute.xlu0 %958
        %962 = vset.pattern.permute.xlu0 0
        %963 = vperm.xlu0 %962, %v905
        %v964 = vpop.permute.xlu0 %963
        %967 = vset.pattern.permute.xlu0 0
        %968 = vperm.xlu0 %967, %v906
        %v969 = vpop.permute.xlu0 %968
        %972 = vset.pattern.permute.xlu0 0
        %973 = vperm.xlu0 %972, %v907
        %v974 = vpop.permute.xlu0 %973
        %977 = vset.pattern.permute.xlu0 0
        %978 = vperm.xlu0 %977, %v908
        %v979 = vpop.permute.xlu0 %978
        %982 = vset.pattern.permute.xlu0 0
        %983 = vperm.xlu0 %982, %v909
        %v984 = vpop.permute.xlu0 %983
        %987 = vset.pattern.permute.xlu0 0
        %988 = vperm.xlu0 %987, %v910
        %v989 = vpop.permute.xlu0 %988
        %992 = vset.pattern.permute.xlu0 0
        %993 = vperm.xlu0 %992, %v911
        %v994 = vpop.permute.xlu0 %993
        %997 = vset.pattern.permute.xlu0 0
        %998 = vperm.xlu0 %997, %v912
        %v999 = vpop.permute.xlu0 %998
        %1002 = vset.pattern.permute.xlu0 0
        %1003 = vperm.xlu0 %1002, %v913
        %v1004 = vpop.permute.xlu0 %1003
        %1007 = vset.pattern.permute.xlu0 0
        %1008 = vperm.xlu0 %1007, %v914
        %v1009 = vpop.permute.xlu0 %1008
        %1012 = vset.pattern.permute.xlu0 0
        %1013 = vperm.xlu0 %1012, %v915
        %v1014 = vpop.permute.xlu0 %1013
        %1017 = vset.pattern.permute.xlu0 0
        %1018 = vperm.xlu0 %1017, %v916
        %v1019 = vpop.permute.xlu0 %1018
        %1022 = vset.pattern.permute.xlu0 0
        %1023 = vperm.xlu0 %1022, %v917
        %v1024 = vpop.permute.xlu0 %1023
        %1027 = vset.pattern.permute.xlu0 0
        %1028 = vperm.xlu0 %1027, %v918
        %v1029 = vpop.permute.xlu0 %1028
        %1032 = vset.pattern.permute.xlu0 0
        %1033 = vperm.xlu0 %1032, %v919
        %v1034 = vpop.permute.xlu0 %1033
        %1037 = vset.pattern.permute.xlu0 0
        %1038 = vperm.xlu0 %1037, %v920
        %v1039 = vpop.permute.xlu0 %1038
        %1042 = vset.pattern.permute.xlu0 0
        %1043 = vperm.xlu0 %1042, %v921
        %v1044 = vpop.permute.xlu0 %1043
        %1047 = vset.pattern.permute.xlu0 0
        %1048 = vperm.xlu0 %1047, %v922
        %v1049 = vpop.permute.xlu0 %1048
        %1052 = vset.pattern.permute.xlu0 0
        %1053 = vperm.xlu0 %1052, %v923
        %v1054 = vpop.permute.xlu0 %1053
        %1057 = vset.pattern.permute.xlu0 0
        %1058 = vperm.xlu0 %1057, %v924
        %v1059 = vpop.permute.xlu0 %1058
        %1062 = vset.pattern.permute.xlu0 0
        %1063 = vperm.xlu0 %1062, %v925
        %v1064 = vpop.permute.xlu0 %1063
        %1067 = vset.pattern.permute.xlu0 0
        %1068 = vperm.xlu0 %1067, %v926
        %v1069 = vpop.permute.xlu0 %1068
        %1072 = vset.pattern.permute.xlu0 0
        %1073 = vperm.xlu0 %1072, %v927
        %v1074 = vpop.permute.xlu0 %1073
        %1077 = vset.pattern.permute.xlu0 0
        %1078 = vperm.xlu0 %1077, %v928
        %v1079 = vpop.permute.xlu0 %1078
        %1082 = vset.pattern.permute.xlu0 0
        %1083 = vperm.xlu0 %1082, %v929
        %v1084 = vpop.permute.xlu0 %1083
        %1087 = vset.pattern.permute.xlu0 0
        %1088 = vperm.xlu0 %1087, %v930
        %v1089 = vpop.permute.xlu0 %1088
        %1091 = vmatprep.subr.mxu0 0.0
        %1092 = vmatpush1.msra.mxu0 %v866
        %1093 = vmatprep.subr.mxu0 0.0
        %1094 = vmatpush1.msra.mxu0 %v865
        %1095 = vmatprep.subr.mxu0 0.0
        %1096 = vmatpush1.msra.mxu0 %v864
        %1097 = vmatprep.subr.mxu0 0.0
        %1098 = vmatpush1.msra.mxu0 %v863
        %1099 = vmatprep.subr.mxu0 0.0
        %1100 = vmatpush1.msra.mxu0 %v862
        %1101 = vmatprep.subr.mxu0 0.0
        %1102 = vmatpush1.msra.mxu0 %v861
        %1103 = vmatprep.subr.mxu0 0.0
        %1104 = vmatpush1.msra.mxu0 %v860
        %1105 = vmatprep.subr.mxu0 0.0
        %1106 = vmatpush1.msra.mxu0 %v859
        %1107 = vmatprep.subr.mxu0 0.0
        %1108 = vmatpush1.msra.mxu0 %v858
        %1109 = vmatprep.subr.mxu0 0.0
        %1110 = vmatpush1.msra.mxu0 %v857
        %1111 = vmatprep.subr.mxu0 0.0
        %1112 = vmatpush1.msra.mxu0 %v856
        %1113 = vmatprep.subr.mxu0 0.0
        %1114 = vmatpush1.msra.mxu0 %v855
        %1115 = vmatprep.subr.mxu0 0.0
        %1116 = vmatpush1.msra.mxu0 %v854
        %1117 = vmatprep.subr.mxu0 0.0
        %1118 = vmatpush1.msra.mxu0 %v853
        %1119 = vmatprep.subr.mxu0 0.0
        %1120 = vmatpush1.msra.mxu0 %v852
        %1121 = vmatprep.subr.mxu0 0.0
        %1122 = vmatpush1.msra.mxu0 %v851
        %1123 = vmatprep.subr.mxu0 0.0
        %1124 = vmatpush2.msra.mxu0 0.0
        %1125 = vmatprep.subr.mxu0 0.0
        %1126 = vmatpush2.msra.mxu0 0.0
        %1127 = vmatprep.subr.mxu0 0.0
        %1128 = vmatpush2.msra.mxu0 0.0
        %1129 = vmatprep.subr.mxu0 0.0
        %1130 = vmatpush2.msra.mxu0 0.0
        %1131 = vmatprep.subr.mxu0 0.0
        %1132 = vmatpush2.msra.mxu0 0.0
        %1133 = vmatprep.subr.mxu0 0.0
        %1134 = vmatpush2.msra.mxu0 0.0
        %1135 = vmatprep.subr.mxu0 0.0
        %1136 = vmatpush2.msra.mxu0 0.0
        %1137 = vmatprep.subr.mxu0 0.0
        %1138 = vmatpush2.msra.mxu0 0.0
        %1139 = vmatprep.subr.mxu0 0.0
        %1140 = vmatpush2.msra.mxu0 0.0
        %1141 = vmatprep.subr.mxu0 0.0
        %1142 = vmatpush2.msra.mxu0 0.0
        %1143 = vmatprep.subr.mxu0 0.0
        %1144 = vmatpush2.msra.mxu0 0.0
        %1145 = vmatprep.subr.mxu0 0.0
        %1146 = vmatpush2.msra.mxu0 0.0
        %1147 = vmatprep.subr.mxu0 0.0
        %1148 = vmatpush2.msra.mxu0 0.0
        %1149 = vmatprep.subr.mxu0 0.0
        %1150 = vmatpush2.msra.mxu0 0.0
        %1151 = vmatprep.subr.mxu0 0.0
        %1152 = vmatpush2.msra.mxu0 0.0
        %1153 = vmatprep.subr.mxu0 0.0
        %1154 = vmatpush2.msra.mxu0 0.0
        %1155 = vmatprep.mubr.f32.mxu0 0.0
        %1156 = vmatmul.mubr.f32.gmra.mxu0 %v867
        %v1157 = vpop.f32.mrf.mxu0
        %v1158 = vadd.f32 %v934, %v1157
        %v1159 = vpop.f32.mrf.mxu0
        %1160 = vmatprep.mubr.f32.mxu0 0.0
        %1161 = vmatmul.mubr.f32.gmra.mxu0 %v868
        %v1162 = vpop.f32.mrf.mxu0
        %v1163 = vadd.f32 %v939, %v1162
        %v1164 = vpop.f32.mrf.mxu0
        %1165 = vmatprep.mubr.f32.mxu0 0.0
        %1166 = vmatmul.mubr.f32.gmra.mxu0 %v869
        %v1167 = vpop.f32.mrf.mxu0
        %v1168 = vadd.f32 %v944, %v1167
        %v1169 = vpop.f32.mrf.mxu0
        %1170 = vmatprep.mubr.f32.mxu0 0.0
        %1171 = vmatmul.mubr.f32.gmra.mxu0 %v870
        %v1172 = vpop.f32.mrf.mxu0
        %v1173 = vadd.f32 %v949, %v1172
        %v1174 = vpop.f32.mrf.mxu0
        %1175 = vmatprep.mubr.f32.mxu0 0.0
        %1176 = vmatmul.mubr.f32.gmra.mxu0 %v871
        %v1177 = vpop.f32.mrf.mxu0
        %v1178 = vadd.f32 %v954, %v1177
        %v1179 = vpop.f32.mrf.mxu0
        %1180 = vmatprep.mubr.f32.mxu0 0.0
        %1181 = vmatmul.mubr.f32.gmra.mxu0 %v872
        %v1182 = vpop.f32.mrf.mxu0
        %v1183 = vadd.f32 %v959, %v1182
        %v1184 = vpop.f32.mrf.mxu0
        %1185 = vmatprep.mubr.f32.mxu0 0.0
        %1186 = vmatmul.mubr.f32.gmra.mxu0 %v873
        %v1187 = vpop.f32.mrf.mxu0
        %v1188 = vadd.f32 %v964, %v1187
        %v1189 = vpop.f32.mrf.mxu0
        %1190 = vmatprep.mubr.f32.mxu0 0.0
        %1191 = vmatmul.mubr.f32.gmra.mxu0 %v874
        %v1192 = vpop.f32.mrf.mxu0
        %v1193 = vadd.f32 %v969, %v1192
        %v1194 = vpop.f32.mrf.mxu0
        %1195 = vmatprep.mubr.f32.mxu0 0.0
        %1196 = vmatmul.mubr.f32.gmra.mxu0 %v875
        %v1197 = vpop.f32.mrf.mxu0
        %v1198 = vadd.f32 %v974, %v1197
        %v1199 = vpop.f32.mrf.mxu0
        %1200 = vmatprep.mubr.f32.mxu0 0.0
        %1201 = vmatmul.mubr.f32.gmra.mxu0 %v876
        %v1202 = vpop.f32.mrf.mxu0
        %v1203 = vadd.f32 %v979, %v1202
        %v1204 = vpop.f32.mrf.mxu0
        %1205 = vmatprep.mubr.f32.mxu0 0.0
        %1206 = vmatmul.mubr.f32.gmra.mxu0 %v877
        %v1207 = vpop.f32.mrf.mxu0
        %v1208 = vadd.f32 %v984, %v1207
        %v1209 = vpop.f32.mrf.mxu0
        %1210 = vmatprep.mubr.f32.mxu0 0.0
        %1211 = vmatmul.mubr.f32.gmra.mxu0 %v878
        %v1212 = vpop.f32.mrf.mxu0
        %v1213 = vadd.f32 %v989, %v1212
        %v1214 = vpop.f32.mrf.mxu0
        %1215 = vmatprep.mubr.f32.mxu0 0.0
        %1216 = vmatmul.mubr.f32.gmra.mxu0 %v879
        %v1217 = vpop.f32.mrf.mxu0
        %v1218 = vadd.f32 %v994, %v1217
        %v1219 = vpop.f32.mrf.mxu0
        %1220 = vmatprep.mubr.f32.mxu0 0.0
        %1221 = vmatmul.mubr.f32.gmra.mxu0 %v880
        %v1222 = vpop.f32.mrf.mxu0
        %v1223 = vadd.f32 %v999, %v1222
        %v1224 = vpop.f32.mrf.mxu0
        %1225 = vmatprep.mubr.f32.mxu0 0.0
        %1226 = vmatmul.mubr.f32.gmra.mxu0 %v881
        %v1227 = vpop.f32.mrf.mxu0
        %v1228 = vadd.f32 %v1004, %v1227
        %v1229 = vpop.f32.mrf.mxu0
        %1230 = vmatprep.mubr.f32.mxu0 0.0
        %1231 = vmatmul.mubr.f32.gmra.mxu0 %v882
        %v1232 = vpop.f32.mrf.mxu0
        %v1233 = vadd.f32 %v1009, %v1232
        %v1234 = vpop.f32.mrf.mxu0
        %1235 = vmatprep.mubr.f32.mxu0 0.0
        %1236 = vmatmul.mubr.f32.gmra.mxu0 %v883
        %v1237 = vpop.f32.mrf.mxu0
        %v1238 = vadd.f32 %v1014, %v1237
        %v1239 = vpop.f32.mrf.mxu0
        %1240 = vmatprep.mubr.f32.mxu0 0.0
        %1241 = vmatmul.mubr.f32.gmra.mxu0 %v884
        %v1242 = vpop.f32.mrf.mxu0
        %v1243 = vadd.f32 %v1019, %v1242
        %v1244 = vpop.f32.mrf.mxu0
        %1245 = vmatprep.mubr.f32.mxu0 0.0
        %1246 = vmatmul.mubr.f32.gmra.mxu0 %v885
        %v1247 = vpop.f32.mrf.mxu0
        %v1248 = vadd.f32 %v1024, %v1247
        %v1249 = vpop.f32.mrf.mxu0
        %1250 = vmatprep.mubr.f32.mxu0 0.0
        %1251 = vmatmul.mubr.f32.gmra.mxu0 %v886
        %v1252 = vpop.f32.mrf.mxu0
        %v1253 = vadd.f32 %v1029, %v1252
        %v1254 = vpop.f32.mrf.mxu0
        %1255 = vmatprep.mubr.f32.mxu0 0.0
        %1256 = vmatmul.mubr.f32.gmra.mxu0 %v887
        %v1257 = vpop.f32.mrf.mxu0
        %v1258 = vadd.f32 %v1034, %v1257
        %v1259 = vpop.f32.mrf.mxu0
        %1260 = vmatprep.mubr.f32.mxu0 0.0
        %1261 = vmatmul.mubr.f32.gmra.mxu0 %v888
        %v1262 = vpop.f32.mrf.mxu0
        %v1263 = vadd.f32 %v1039, %v1262
        %v1264 = vpop.f32.mrf.mxu0
        %1265 = vmatprep.mubr.f32.mxu0 0.0
        %1266 = vmatmul.mubr.f32.gmra.mxu0 %v889
        %v1267 = vpop.f32.mrf.mxu0
        %v1268 = vadd.f32 %v1044, %v1267
        %v1269 = vpop.f32.mrf.mxu0
        %1270 = vmatprep.mubr.f32.mxu0 0.0
        %1271 = vmatmul.mubr.f32.gmra.mxu0 %v890
        %v1272 = vpop.f32.mrf.mxu0
        %v1273 = vadd.f32 %v1049, %v1272
        %v1274 = vpop.f32.mrf.mxu0
        %1275 = vmatprep.mubr.f32.mxu0 0.0
        %1276 = vmatmul.mubr.f32.gmra.mxu0 %v891
        %v1277 = vpop.f32.mrf.mxu0
        %v1278 = vadd.f32 %v1054, %v1277
        %v1279 = vpop.f32.mrf.mxu0
        %1280 = vmatprep.mubr.f32.mxu0 0.0
        %1281 = vmatmul.mubr.f32.gmra.mxu0 %v892
        %v1282 = vpop.f32.mrf.mxu0
        %v1283 = vadd.f32 %v1059, %v1282
        %v1284 = vpop.f32.mrf.mxu0
        %1285 = vmatprep.mubr.f32.mxu0 0.0
        %1286 = vmatmul.mubr.f32.gmra.mxu0 %v893
        %v1287 = vpop.f32.mrf.mxu0
        %v1288 = vadd.f32 %v1064, %v1287
        %v1289 = vpop.f32.mrf.mxu0
        %1290 = vmatprep.mubr.f32.mxu0 0.0
        %1291 = vmatmul.mubr.f32.gmra.mxu0 %v894
        %v1292 = vpop.f32.mrf.mxu0
        %v1293 = vadd.f32 %v1069, %v1292
        %v1294 = vpop.f32.mrf.mxu0
        %1295 = vmatprep.mubr.f32.mxu0 0.0
        %1296 = vmatmul.mubr.f32.gmra.mxu0 %v895
        %v1297 = vpop.f32.mrf.mxu0
        %v1298 = vadd.f32 %v1074, %v1297
        %v1299 = vpop.f32.mrf.mxu0
        %1300 = vmatprep.mubr.f32.mxu0 0.0
        %1301 = vmatmul.mubr.f32.gmra.mxu0 %v896
        %v1302 = vpop.f32.mrf.mxu0
        %v1303 = vadd.f32 %v1079, %v1302
        %v1304 = vpop.f32.mrf.mxu0
        %1305 = vmatprep.mubr.f32.mxu0 0.0
        %1306 = vmatmul.mubr.f32.gmra.mxu0 %v897
        %v1307 = vpop.f32.mrf.mxu0
        %v1308 = vadd.f32 %v1084, %v1307
        %v1309 = vpop.f32.mrf.mxu0
        %1310 = vmatprep.mubr.f32.mxu0 0.0
        %1311 = vmatmul.mubr.f32.gmra.mxu0 %v898
        %v1312 = vpop.f32.mrf.mxu0
        %v1313 = vadd.f32 %v1089, %v1312
        %v1314 = vpop.f32.mrf.mxu0
        %1315 = vdwg.mxu0
        %p1316 = scmp.eq.s32.totalorder %s25, 0
        // Predicated region
        $region49: #{_forward.2} parent=47 // pred_check
          %p1317 = pneg %p1316
        $region50: #{_forward.2} parent=47 // pred_check_branch
          %1319 = sbr.rel (%p1317) target = $region52
        $region51: #{_forward.2} parent=47 // pred_region
          %vm1320 = vcmask 7168
          %1321 = vst.msk [vmem:[#allocation2] sm:$0xff] %vm1320, -inf
          %1322 = vst.msk [vmem:[#allocation2 + $0x8] sm:$0xff] %vm1320, -inf
          %1323 = vst.msk [vmem:[#allocation2 + $0x10] sm:$0xff] %vm1320, -inf
          %1324 = vst.msk [vmem:[#allocation2 + $0x18] sm:$0xff] %vm1320, -inf
          %1325 = vst.msk [vmem:[#allocation2 + $0x20] sm:$0xff] %vm1320, -inf
          %1326 = vst.msk [vmem:[#allocation2 + $0x28] sm:$0xff] %vm1320, -inf
          %1327 = vst.msk [vmem:[#allocation2 + $0x30] sm:$0xff] %vm1320, -inf
          %1328 = vst.msk [vmem:[#allocation2 + $0x38] sm:$0xff] %vm1320, -inf
          %1329 = vst.msk [vmem:[#allocation2 + $0x40] sm:$0xff] %vm1320, -inf
          %1330 = vst.msk [vmem:[#allocation2 + $0x48] sm:$0xff] %vm1320, -inf
          %1331 = vst.msk [vmem:[#allocation2 + $0x50] sm:$0xff] %vm1320, -inf
          %1332 = vst.msk [vmem:[#allocation2 + $0x58] sm:$0xff] %vm1320, -inf
          %1333 = vst.msk [vmem:[#allocation2 + $0x60] sm:$0xff] %vm1320, -inf
          %1334 = vst.msk [vmem:[#allocation2 + $0x68] sm:$0xff] %vm1320, -inf
          %1335 = vst.msk [vmem:[#allocation2 + $0x70] sm:$0xff] %vm1320, -inf
          %1336 = vst.msk [vmem:[#allocation2 + $0x78] sm:$0xff] %vm1320, -inf
          %1337 = vst.msk [vmem:[#allocation2 + $0x80] sm:$0xff] %vm1320, -inf
          %1338 = vst.msk [vmem:[#allocation2 + $0x88] sm:$0xff] %vm1320, -inf
          %1339 = vst.msk [vmem:[#allocation2 + $0x90] sm:$0xff] %vm1320, -inf
          %1340 = vst.msk [vmem:[#allocation2 + $0x98] sm:$0xff] %vm1320, -inf
          %1341 = vst.msk [vmem:[#allocation2 + $0xa0] sm:$0xff] %vm1320, -inf
          %1342 = vst.msk [vmem:[#allocation2 + $0xa8] sm:$0xff] %vm1320, -inf
          %1343 = vst.msk [vmem:[#allocation2 + $0xb0] sm:$0xff] %vm1320, -inf
          %1344 = vst.msk [vmem:[#allocation2 + $0xb8] sm:$0xff] %vm1320, -inf
          %1345 = vst.msk [vmem:[#allocation2 + $0xc0] sm:$0xff] %vm1320, -inf
          %1346 = vst.msk [vmem:[#allocation2 + $0xc8] sm:$0xff] %vm1320, -inf
          %1347 = vst.msk [vmem:[#allocation2 + $0xd0] sm:$0xff] %vm1320, -inf
          %1348 = vst.msk [vmem:[#allocation2 + $0xd8] sm:$0xff] %vm1320, -inf
          %1349 = vst.msk [vmem:[#allocation2 + $0xe0] sm:$0xff] %vm1320, -inf
          %1350 = vst.msk [vmem:[#allocation2 + $0xe8] sm:$0xff] %vm1320, -inf
          %1351 = vst.msk [vmem:[#allocation2 + $0xf0] sm:$0xff] %vm1320, -inf
          %1352 = vst.msk [vmem:[#allocation2 + $0xf8] sm:$0xff] %vm1320, -inf
        $region52: #{_forward.2} parent=47 // pred_fallthru
          _
        %p1353 = scmp.ne.s32.totalorder %s25, 1
        // Predicated region
        $region53: #{_forward.2} parent=47 // pred_check
          %p1354 = pneg %p1353
        $region54: #{_forward.2} parent=47 // pred_check_branch
          %1356 = sbr.rel (%p1354) target = $region56
        $region55: #{_forward.2} parent=47 // pred_region
          %v1357 = vld [vmem:[#allocation2] sm:$0xff]
          %v1358 = vld [vmem:[#allocation2 + $0x8] sm:$0xff]
          %v1359 = vld [vmem:[#allocation2 + $0x10] sm:$0xff]
          %v1360 = vld [vmem:[#allocation2 + $0x18] sm:$0xff]
          %v1361 = vld [vmem:[#allocation2 + $0x20] sm:$0xff]
          %v1362 = vld [vmem:[#allocation2 + $0x28] sm:$0xff]
          %v1363 = vld [vmem:[#allocation2 + $0x30] sm:$0xff]
          %v1364 = vld [vmem:[#allocation2 + $0x38] sm:$0xff]
          %v1365 = vld [vmem:[#allocation2 + $0x40] sm:$0xff]
          %v1366 = vld [vmem:[#allocation2 + $0x48] sm:$0xff]
          %v1367 = vld [vmem:[#allocation2 + $0x50] sm:$0xff]
          %v1368 = vld [vmem:[#allocation2 + $0x58] sm:$0xff]
          %v1369 = vld [vmem:[#allocation2 + $0x60] sm:$0xff]
          %v1370 = vld [vmem:[#allocation2 + $0x68] sm:$0xff]
          %v1371 = vld [vmem:[#allocation2 + $0x70] sm:$0xff]
          %v1372 = vld [vmem:[#allocation2 + $0x78] sm:$0xff]
          %v1373 = vld [vmem:[#allocation2 + $0x80] sm:$0xff]
          %v1374 = vld [vmem:[#allocation2 + $0x88] sm:$0xff]
          %v1375 = vld [vmem:[#allocation2 + $0x90] sm:$0xff]
          %v1376 = vld [vmem:[#allocation2 + $0x98] sm:$0xff]
          %v1377 = vld [vmem:[#allocation2 + $0xa0] sm:$0xff]
          %v1378 = vld [vmem:[#allocation2 + $0xa8] sm:$0xff]
          %v1379 = vld [vmem:[#allocation2 + $0xb0] sm:$0xff]
          %v1380 = vld [vmem:[#allocation2 + $0xb8] sm:$0xff]
          %v1381 = vld [vmem:[#allocation2 + $0xc0] sm:$0xff]
          %v1382 = vld [vmem:[#allocation2 + $0xc8] sm:$0xff]
          %v1383 = vld [vmem:[#allocation2 + $0xd0] sm:$0xff]
          %v1384 = vld [vmem:[#allocation2 + $0xd8] sm:$0xff]
          %v1385 = vld [vmem:[#allocation2 + $0xe0] sm:$0xff]
          %v1386 = vld [vmem:[#allocation2 + $0xe8] sm:$0xff]
          %v1387 = vld [vmem:[#allocation2 + $0xf0] sm:$0xff]
          %v1388 = vld [vmem:[#allocation2 + $0xf8] sm:$0xff]
          %1389 = vmax.xlane.f32.xlu0 %v1158
          %v1390 = vpop.xlane.xlu0 %1389
          %1391 = vmax.xlane.f32.xlu0 %v1163
          %v1392 = vpop.xlane.xlu0 %1391
          %1393 = vmax.xlane.f32.xlu0 %v1168
          %v1394 = vpop.xlane.xlu0 %1393
          %1395 = vmax.xlane.f32.xlu0 %v1173
          %v1396 = vpop.xlane.xlu0 %1395
          %1397 = vmax.xlane.f32.xlu0 %v1178
          %v1398 = vpop.xlane.xlu0 %1397
          %1399 = vmax.xlane.f32.xlu0 %v1183
          %v1400 = vpop.xlane.xlu0 %1399
          %1401 = vmax.xlane.f32.xlu0 %v1188
          %v1402 = vpop.xlane.xlu0 %1401
          %1403 = vmax.xlane.f32.xlu0 %v1193
          %v1404 = vpop.xlane.xlu0 %1403
          %1405 = vmax.xlane.f32.xlu0 %v1198
          %v1406 = vpop.xlane.xlu0 %1405
          %1407 = vmax.xlane.f32.xlu0 %v1203
          %v1408 = vpop.xlane.xlu0 %1407
          %1409 = vmax.xlane.f32.xlu0 %v1208
          %v1410 = vpop.xlane.xlu0 %1409
          %1411 = vmax.xlane.f32.xlu0 %v1213
          %v1412 = vpop.xlane.xlu0 %1411
          %1413 = vmax.xlane.f32.xlu0 %v1218
          %v1414 = vpop.xlane.xlu0 %1413
          %1415 = vmax.xlane.f32.xlu0 %v1223
          %v1416 = vpop.xlane.xlu0 %1415
          %1417 = vmax.xlane.f32.xlu0 %v1228
          %v1418 = vpop.xlane.xlu0 %1417
          %1419 = vmax.xlane.f32.xlu0 %v1233
          %v1420 = vpop.xlane.xlu0 %1419
          %1421 = vmax.xlane.f32.xlu0 %v1238
          %v1422 = vpop.xlane.xlu0 %1421
          %1423 = vmax.xlane.f32.xlu0 %v1243
          %v1424 = vpop.xlane.xlu0 %1423
          %1425 = vmax.xlane.f32.xlu0 %v1248
          %v1426 = vpop.xlane.xlu0 %1425
          %1427 = vmax.xlane.f32.xlu0 %v1253
          %v1428 = vpop.xlane.xlu0 %1427
          %1429 = vmax.xlane.f32.xlu0 %v1258
          %v1430 = vpop.xlane.xlu0 %1429
          %1431 = vmax.xlane.f32.xlu0 %v1263
          %v1432 = vpop.xlane.xlu0 %1431
          %1433 = vmax.xlane.f32.xlu0 %v1268
          %v1434 = vpop.xlane.xlu0 %1433
          %1435 = vmax.xlane.f32.xlu0 %v1273
          %v1436 = vpop.xlane.xlu0 %1435
          %1437 = vmax.xlane.f32.xlu0 %v1278
          %v1438 = vpop.xlane.xlu0 %1437
          %1439 = vmax.xlane.f32.xlu0 %v1283
          %v1440 = vpop.xlane.xlu0 %1439
          %1441 = vmax.xlane.f32.xlu0 %v1288
          %v1442 = vpop.xlane.xlu0 %1441
          %1443 = vmax.xlane.f32.xlu0 %v1293
          %v1444 = vpop.xlane.xlu0 %1443
          %1445 = vmax.xlane.f32.xlu0 %v1298
          %v1446 = vpop.xlane.xlu0 %1445
          %1447 = vmax.xlane.f32.xlu0 %v1303
          %v1448 = vpop.xlane.xlu0 %1447
          %1449 = vmax.xlane.f32.xlu0 %v1308
          %v1450 = vpop.xlane.xlu0 %1449
          %1451 = vmax.xlane.f32.xlu0 %v1313
          %v1452 = vpop.xlane.xlu0 %1451
          %v1453 = vmax.f32 %v1357, %v1390
          %v1454 = vmax.f32 %v1358, %v1392
          %v1455 = vmax.f32 %v1359, %v1394
          %v1456 = vmax.f32 %v1360, %v1396
          %v1457 = vmax.f32 %v1361, %v1398
          %v1458 = vmax.f32 %v1362, %v1400
          %v1459 = vmax.f32 %v1363, %v1402
          %v1460 = vmax.f32 %v1364, %v1404
          %v1461 = vmax.f32 %v1365, %v1406
          %v1462 = vmax.f32 %v1366, %v1408
          %v1463 = vmax.f32 %v1367, %v1410
          %v1464 = vmax.f32 %v1368, %v1412
          %v1465 = vmax.f32 %v1369, %v1414
          %v1466 = vmax.f32 %v1370, %v1416
          %v1467 = vmax.f32 %v1371, %v1418
          %v1468 = vmax.f32 %v1372, %v1420
          %v1469 = vmax.f32 %v1373, %v1422
          %v1470 = vmax.f32 %v1374, %v1424
          %v1471 = vmax.f32 %v1375, %v1426
          %v1472 = vmax.f32 %v1376, %v1428
          %v1473 = vmax.f32 %v1377, %v1430
          %v1474 = vmax.f32 %v1378, %v1432
          %v1475 = vmax.f32 %v1379, %v1434
          %v1476 = vmax.f32 %v1380, %v1436
          %v1477 = vmax.f32 %v1381, %v1438
          %v1478 = vmax.f32 %v1382, %v1440
          %v1479 = vmax.f32 %v1383, %v1442
          %v1480 = vmax.f32 %v1384, %v1444
          %v1481 = vmax.f32 %v1385, %v1446
          %v1482 = vmax.f32 %v1386, %v1448
          %v1483 = vmax.f32 %v1387, %v1450
          %v1484 = vmax.f32 %v1388, %v1452
          %vm1485 = vcmask 7168
          %1486 = vst.msk [vmem:[#allocation2] sm:$0xff] %vm1485, %v1453
          %1487 = vst.msk [vmem:[#allocation2 + $0x8] sm:$0xff] %vm1485, %v1454
          %1488 = vst.msk [vmem:[#allocation2 + $0x10] sm:$0xff] %vm1485, %v1455
          %1489 = vst.msk [vmem:[#allocation2 + $0x18] sm:$0xff] %vm1485, %v1456
          %1490 = vst.msk [vmem:[#allocation2 + $0x20] sm:$0xff] %vm1485, %v1457
          %1491 = vst.msk [vmem:[#allocation2 + $0x28] sm:$0xff] %vm1485, %v1458
          %1492 = vst.msk [vmem:[#allocation2 + $0x30] sm:$0xff] %vm1485, %v1459
          %1493 = vst.msk [vmem:[#allocation2 + $0x38] sm:$0xff] %vm1485, %v1460
          %1494 = vst.msk [vmem:[#allocation2 + $0x40] sm:$0xff] %vm1485, %v1461
          %1495 = vst.msk [vmem:[#allocation2 + $0x48] sm:$0xff] %vm1485, %v1462
          %1496 = vst.msk [vmem:[#allocation2 + $0x50] sm:$0xff] %vm1485, %v1463
          %1497 = vst.msk [vmem:[#allocation2 + $0x58] sm:$0xff] %vm1485, %v1464
          %1498 = vst.msk [vmem:[#allocation2 + $0x60] sm:$0xff] %vm1485, %v1465
          %1499 = vst.msk [vmem:[#allocation2 + $0x68] sm:$0xff] %vm1485, %v1466
          %1500 = vst.msk [vmem:[#allocation2 + $0x70] sm:$0xff] %vm1485, %v1467
          %1501 = vst.msk [vmem:[#allocation2 + $0x78] sm:$0xff] %vm1485, %v1468
          %1502 = vst.msk [vmem:[#allocation2 + $0x80] sm:$0xff] %vm1485, %v1469
          %1503 = vst.msk [vmem:[#allocation2 + $0x88] sm:$0xff] %vm1485, %v1470
          %1504 = vst.msk [vmem:[#allocation2 + $0x90] sm:$0xff] %vm1485, %v1471
          %1505 = vst.msk [vmem:[#allocation2 + $0x98] sm:$0xff] %vm1485, %v1472
          %1506 = vst.msk [vmem:[#allocation2 + $0xa0] sm:$0xff] %vm1485, %v1473
          %1507 = vst.msk [vmem:[#allocation2 + $0xa8] sm:$0xff] %vm1485, %v1474
          %1508 = vst.msk [vmem:[#allocation2 + $0xb0] sm:$0xff] %vm1485, %v1475
          %1509 = vst.msk [vmem:[#allocation2 + $0xb8] sm:$0xff] %vm1485, %v1476
          %1510 = vst.msk [vmem:[#allocation2 + $0xc0] sm:$0xff] %vm1485, %v1477
          %1511 = vst.msk [vmem:[#allocation2 + $0xc8] sm:$0xff] %vm1485, %v1478
          %1512 = vst.msk [vmem:[#allocation2 + $0xd0] sm:$0xff] %vm1485, %v1479
          %1513 = vst.msk [vmem:[#allocation2 + $0xd8] sm:$0xff] %vm1485, %v1480
          %1514 = vst.msk [vmem:[#allocation2 + $0xe0] sm:$0xff] %vm1485, %v1481
          %1515 = vst.msk [vmem:[#allocation2 + $0xe8] sm:$0xff] %vm1485, %v1482
          %1516 = vst.msk [vmem:[#allocation2 + $0xf0] sm:$0xff] %vm1485, %v1483
          %1517 = vst.msk [vmem:[#allocation2 + $0xf8] sm:$0xff] %vm1485, %v1484
        $region56: #{_forward.2} parent=47 // pred_fallthru
          _
        %p1518 = scmp.eq.s32.totalorder %s25, 1
        // Predicated region
        $region57: #{_forward.2} parent=47 // pred_check
          %p1519 = pneg %p1518
        $region58: #{_forward.2} parent=47 // pred_check_branch
          %1521 = sbr.rel (%p1519) target = $region60
        $region59: #{_forward.2} parent=47 // pred_region
          %v1522 = vlaneseq
          %v1523 = vand.u32 %v1522, 127
          %s1524 = smul.u32 %s25, 128
          %v1525 = vstv %s1524
          %v1526 = vadd.s32 %v1525, %v1523
          %vm1527 = vcmp.lt.s32.totalorder %v1526, 200
          %v1528 = vsel %vm1527, %v1158, -inf
          %v1529 = vsel %vm1527, %v1163, -inf
          %v1530 = vsel %vm1527, %v1168, -inf
          %v1531 = vsel %vm1527, %v1173, -inf
          %v1532 = vsel %vm1527, %v1178, -inf
          %v1533 = vsel %vm1527, %v1183, -inf
          %v1534 = vsel %vm1527, %v1188, -inf
          %v1535 = vsel %vm1527, %v1193, -inf
          %v1536 = vsel %vm1527, %v1198, -inf
          %v1537 = vsel %vm1527, %v1203, -inf
          %v1538 = vsel %vm1527, %v1208, -inf
          %v1539 = vsel %vm1527, %v1213, -inf
          %v1540 = vsel %vm1527, %v1218, -inf
          %v1541 = vsel %vm1527, %v1223, -inf
          %v1542 = vsel %vm1527, %v1228, -inf
          %v1543 = vsel %vm1527, %v1233, -inf
          %v1544 = vsel %vm1527, %v1238, -inf
          %v1545 = vsel %vm1527, %v1243, -inf
          %v1546 = vsel %vm1527, %v1248, -inf
          %v1547 = vsel %vm1527, %v1253, -inf
          %v1548 = vsel %vm1527, %v1258, -inf
          %v1549 = vsel %vm1527, %v1263, -inf
          %v1550 = vsel %vm1527, %v1268, -inf
          %v1551 = vsel %vm1527, %v1273, -inf
          %v1552 = vsel %vm1527, %v1278, -inf
          %v1553 = vsel %vm1527, %v1283, -inf
          %v1554 = vsel %vm1527, %v1288, -inf
          %v1555 = vsel %vm1527, %v1293, -inf
          %v1556 = vsel %vm1527, %v1298, -inf
          %v1557 = vsel %vm1527, %v1303, -inf
          %v1558 = vsel %vm1527, %v1308, -inf
          %v1559 = vsel %vm1527, %v1313, -inf
          %v1560 = vld [vmem:[#allocation2] sm:$0xff]
          %v1561 = vld [vmem:[#allocation2 + $0x8] sm:$0xff]
          %v1562 = vld [vmem:[#allocation2 + $0x10] sm:$0xff]
          %v1563 = vld [vmem:[#allocation2 + $0x18] sm:$0xff]
          %v1564 = vld [vmem:[#allocation2 + $0x20] sm:$0xff]
          %v1565 = vld [vmem:[#allocation2 + $0x28] sm:$0xff]
          %v1566 = vld [vmem:[#allocation2 + $0x30] sm:$0xff]
          %v1567 = vld [vmem:[#allocation2 + $0x38] sm:$0xff]
          %v1568 = vld [vmem:[#allocation2 + $0x40] sm:$0xff]
          %v1569 = vld [vmem:[#allocation2 + $0x48] sm:$0xff]
          %v1570 = vld [vmem:[#allocation2 + $0x50] sm:$0xff]
          %v1571 = vld [vmem:[#allocation2 + $0x58] sm:$0xff]
          %v1572 = vld [vmem:[#allocation2 + $0x60] sm:$0xff]
          %v1573 = vld [vmem:[#allocation2 + $0x68] sm:$0xff]
          %v1574 = vld [vmem:[#allocation2 + $0x70] sm:$0xff]
          %v1575 = vld [vmem:[#allocation2 + $0x78] sm:$0xff]
          %v1576 = vld [vmem:[#allocation2 + $0x80] sm:$0xff]
          %v1577 = vld [vmem:[#allocation2 + $0x88] sm:$0xff]
          %v1578 = vld [vmem:[#allocation2 + $0x90] sm:$0xff]
          %v1579 = vld [vmem:[#allocation2 + $0x98] sm:$0xff]
          %v1580 = vld [vmem:[#allocation2 + $0xa0] sm:$0xff]
          %v1581 = vld [vmem:[#allocation2 + $0xa8] sm:$0xff]
          %v1582 = vld [vmem:[#allocation2 + $0xb0] sm:$0xff]
          %v1583 = vld [vmem:[#allocation2 + $0xb8] sm:$0xff]
          %v1584 = vld [vmem:[#allocation2 + $0xc0] sm:$0xff]
          %v1585 = vld [vmem:[#allocation2 + $0xc8] sm:$0xff]
          %v1586 = vld [vmem:[#allocation2 + $0xd0] sm:$0xff]
          %v1587 = vld [vmem:[#allocation2 + $0xd8] sm:$0xff]
          %v1588 = vld [vmem:[#allocation2 + $0xe0] sm:$0xff]
          %v1589 = vld [vmem:[#allocation2 + $0xe8] sm:$0xff]
          %v1590 = vld [vmem:[#allocation2 + $0xf0] sm:$0xff]
          %v1591 = vld [vmem:[#allocation2 + $0xf8] sm:$0xff]
          %1592 = vmax.xlane.f32.xlu0 %v1528
          %v1593 = vpop.xlane.xlu0 %1592
          %1594 = vmax.xlane.f32.xlu0 %v1529
          %v1595 = vpop.xlane.xlu0 %1594
          %1596 = vmax.xlane.f32.xlu0 %v1530
          %v1597 = vpop.xlane.xlu0 %1596
          %1598 = vmax.xlane.f32.xlu0 %v1531
          %v1599 = vpop.xlane.xlu0 %1598
          %1600 = vmax.xlane.f32.xlu0 %v1532
          %v1601 = vpop.xlane.xlu0 %1600
          %1602 = vmax.xlane.f32.xlu0 %v1533
          %v1603 = vpop.xlane.xlu0 %1602
          %1604 = vmax.xlane.f32.xlu0 %v1534
          %v1605 = vpop.xlane.xlu0 %1604
          %1606 = vmax.xlane.f32.xlu0 %v1535
          %v1607 = vpop.xlane.xlu0 %1606
          %1608 = vmax.xlane.f32.xlu0 %v1536
          %v1609 = vpop.xlane.xlu0 %1608
          %1610 = vmax.xlane.f32.xlu0 %v1537
          %v1611 = vpop.xlane.xlu0 %1610
          %1612 = vmax.xlane.f32.xlu0 %v1538
          %v1613 = vpop.xlane.xlu0 %1612
          %1614 = vmax.xlane.f32.xlu0 %v1539
          %v1615 = vpop.xlane.xlu0 %1614
          %1616 = vmax.xlane.f32.xlu0 %v1540
          %v1617 = vpop.xlane.xlu0 %1616
          %1618 = vmax.xlane.f32.xlu0 %v1541
          %v1619 = vpop.xlane.xlu0 %1618
          %1620 = vmax.xlane.f32.xlu0 %v1542
          %v1621 = vpop.xlane.xlu0 %1620
          %1622 = vmax.xlane.f32.xlu0 %v1543
          %v1623 = vpop.xlane.xlu0 %1622
          %1624 = vmax.xlane.f32.xlu0 %v1544
          %v1625 = vpop.xlane.xlu0 %1624
          %1626 = vmax.xlane.f32.xlu0 %v1545
          %v1627 = vpop.xlane.xlu0 %1626
          %1628 = vmax.xlane.f32.xlu0 %v1546
          %v1629 = vpop.xlane.xlu0 %1628
          %1630 = vmax.xlane.f32.xlu0 %v1547
          %v1631 = vpop.xlane.xlu0 %1630
          %1632 = vmax.xlane.f32.xlu0 %v1548
          %v1633 = vpop.xlane.xlu0 %1632
          %1634 = vmax.xlane.f32.xlu0 %v1549
          %v1635 = vpop.xlane.xlu0 %1634
          %1636 = vmax.xlane.f32.xlu0 %v1550
          %v1637 = vpop.xlane.xlu0 %1636
          %1638 = vmax.xlane.f32.xlu0 %v1551
          %v1639 = vpop.xlane.xlu0 %1638
          %1640 = vmax.xlane.f32.xlu0 %v1552
          %v1641 = vpop.xlane.xlu0 %1640
          %1642 = vmax.xlane.f32.xlu0 %v1553
          %v1643 = vpop.xlane.xlu0 %1642
          %1644 = vmax.xlane.f32.xlu0 %v1554
          %v1645 = vpop.xlane.xlu0 %1644
          %1646 = vmax.xlane.f32.xlu0 %v1555
          %v1647 = vpop.xlane.xlu0 %1646
          %1648 = vmax.xlane.f32.xlu0 %v1556
          %v1649 = vpop.xlane.xlu0 %1648
          %1650 = vmax.xlane.f32.xlu0 %v1557
          %v1651 = vpop.xlane.xlu0 %1650
          %1652 = vmax.xlane.f32.xlu0 %v1558
          %v1653 = vpop.xlane.xlu0 %1652
          %1654 = vmax.xlane.f32.xlu0 %v1559
          %v1655 = vpop.xlane.xlu0 %1654
          %v1656 = vmax.f32 %v1560, %v1593
          %v1657 = vmax.f32 %v1561, %v1595
          %v1658 = vmax.f32 %v1562, %v1597
          %v1659 = vmax.f32 %v1563, %v1599
          %v1660 = vmax.f32 %v1564, %v1601
          %v1661 = vmax.f32 %v1565, %v1603
          %v1662 = vmax.f32 %v1566, %v1605
          %v1663 = vmax.f32 %v1567, %v1607
          %v1664 = vmax.f32 %v1568, %v1609
          %v1665 = vmax.f32 %v1569, %v1611
          %v1666 = vmax.f32 %v1570, %v1613
          %v1667 = vmax.f32 %v1571, %v1615
          %v1668 = vmax.f32 %v1572, %v1617
          %v1669 = vmax.f32 %v1573, %v1619
          %v1670 = vmax.f32 %v1574, %v1621
          %v1671 = vmax.f32 %v1575, %v1623
          %v1672 = vmax.f32 %v1576, %v1625
          %v1673 = vmax.f32 %v1577, %v1627
          %v1674 = vmax.f32 %v1578, %v1629
          %v1675 = vmax.f32 %v1579, %v1631
          %v1676 = vmax.f32 %v1580, %v1633
          %v1677 = vmax.f32 %v1581, %v1635
          %v1678 = vmax.f32 %v1582, %v1637
          %v1679 = vmax.f32 %v1583, %v1639
          %v1680 = vmax.f32 %v1584, %v1641
          %v1681 = vmax.f32 %v1585, %v1643
          %v1682 = vmax.f32 %v1586, %v1645
          %v1683 = vmax.f32 %v1587, %v1647
          %v1684 = vmax.f32 %v1588, %v1649
          %v1685 = vmax.f32 %v1589, %v1651
          %v1686 = vmax.f32 %v1590, %v1653
          %v1687 = vmax.f32 %v1591, %v1655
          %vm1688 = vcmask 7168
          %1689 = vst.msk [vmem:[#allocation2] sm:$0xff] %vm1688, %v1656
          %1690 = vst.msk [vmem:[#allocation2 + $0x8] sm:$0xff] %vm1688, %v1657
          %1691 = vst.msk [vmem:[#allocation2 + $0x10] sm:$0xff] %vm1688, %v1658
          %1692 = vst.msk [vmem:[#allocation2 + $0x18] sm:$0xff] %vm1688, %v1659
          %1693 = vst.msk [vmem:[#allocation2 + $0x20] sm:$0xff] %vm1688, %v1660
          %1694 = vst.msk [vmem:[#allocation2 + $0x28] sm:$0xff] %vm1688, %v1661
          %1695 = vst.msk [vmem:[#allocation2 + $0x30] sm:$0xff] %vm1688, %v1662
          %1696 = vst.msk [vmem:[#allocation2 + $0x38] sm:$0xff] %vm1688, %v1663
          %1697 = vst.msk [vmem:[#allocation2 + $0x40] sm:$0xff] %vm1688, %v1664
          %1698 = vst.msk [vmem:[#allocation2 + $0x48] sm:$0xff] %vm1688, %v1665
          %1699 = vst.msk [vmem:[#allocation2 + $0x50] sm:$0xff] %vm1688, %v1666
          %1700 = vst.msk [vmem:[#allocation2 + $0x58] sm:$0xff] %vm1688, %v1667
          %1701 = vst.msk [vmem:[#allocation2 + $0x60] sm:$0xff] %vm1688, %v1668
          %1702 = vst.msk [vmem:[#allocation2 + $0x68] sm:$0xff] %vm1688, %v1669
          %1703 = vst.msk [vmem:[#allocation2 + $0x70] sm:$0xff] %vm1688, %v1670
          %1704 = vst.msk [vmem:[#allocation2 + $0x78] sm:$0xff] %vm1688, %v1671
          %1705 = vst.msk [vmem:[#allocation2 + $0x80] sm:$0xff] %vm1688, %v1672
          %1706 = vst.msk [vmem:[#allocation2 + $0x88] sm:$0xff] %vm1688, %v1673
          %1707 = vst.msk [vmem:[#allocation2 + $0x90] sm:$0xff] %vm1688, %v1674
          %1708 = vst.msk [vmem:[#allocation2 + $0x98] sm:$0xff] %vm1688, %v1675
          %1709 = vst.msk [vmem:[#allocation2 + $0xa0] sm:$0xff] %vm1688, %v1676
          %1710 = vst.msk [vmem:[#allocation2 + $0xa8] sm:$0xff] %vm1688, %v1677
          %1711 = vst.msk [vmem:[#allocation2 + $0xb0] sm:$0xff] %vm1688, %v1678
          %1712 = vst.msk [vmem:[#allocation2 + $0xb8] sm:$0xff] %vm1688, %v1679
          %1713 = vst.msk [vmem:[#allocation2 + $0xc0] sm:$0xff] %vm1688, %v1680
          %1714 = vst.msk [vmem:[#allocation2 + $0xc8] sm:$0xff] %vm1688, %v1681
          %1715 = vst.msk [vmem:[#allocation2 + $0xd0] sm:$0xff] %vm1688, %v1682
          %1716 = vst.msk [vmem:[#allocation2 + $0xd8] sm:$0xff] %vm1688, %v1683
          %1717 = vst.msk [vmem:[#allocation2 + $0xe0] sm:$0xff] %vm1688, %v1684
          %1718 = vst.msk [vmem:[#allocation2 + $0xe8] sm:$0xff] %vm1688, %v1685
          %1719 = vst.msk [vmem:[#allocation2 + $0xf0] sm:$0xff] %vm1688, %v1686
          %1720 = vst.msk [vmem:[#allocation2 + $0xf8] sm:$0xff] %vm1688, %v1687
          %v1721 = vld [vmem:[#allocation2] sm:$0xff]
          %v1722 = vld [vmem:[#allocation2 + $0x8] sm:$0xff]
          %v1723 = vld [vmem:[#allocation2 + $0x10] sm:$0xff]
          %v1724 = vld [vmem:[#allocation2 + $0x18] sm:$0xff]
          %v1725 = vld [vmem:[#allocation2 + $0x20] sm:$0xff]
          %v1726 = vld [vmem:[#allocation2 + $0x28] sm:$0xff]
          %v1727 = vld [vmem:[#allocation2 + $0x30] sm:$0xff]
          %v1728 = vld [vmem:[#allocation2 + $0x38] sm:$0xff]
          %v1729 = vld [vmem:[#allocation2 + $0x40] sm:$0xff]
          %v1730 = vld [vmem:[#allocation2 + $0x48] sm:$0xff]
          %v1731 = vld [vmem:[#allocation2 + $0x50] sm:$0xff]
          %v1732 = vld [vmem:[#allocation2 + $0x58] sm:$0xff]
          %v1733 = vld [vmem:[#allocation2 + $0x60] sm:$0xff]
          %v1734 = vld [vmem:[#allocation2 + $0x68] sm:$0xff]
          %v1735 = vld [vmem:[#allocation2 + $0x70] sm:$0xff]
          %v1736 = vld [vmem:[#allocation2 + $0x78] sm:$0xff]
          %v1737 = vld [vmem:[#allocation2 + $0x80] sm:$0xff]
          %v1738 = vld [vmem:[#allocation2 + $0x88] sm:$0xff]
          %v1739 = vld [vmem:[#allocation2 + $0x90] sm:$0xff]
          %v1740 = vld [vmem:[#allocation2 + $0x98] sm:$0xff]
          %v1741 = vld [vmem:[#allocation2 + $0xa0] sm:$0xff]
          %v1742 = vld [vmem:[#allocation2 + $0xa8] sm:$0xff]
          %v1743 = vld [vmem:[#allocation2 + $0xb0] sm:$0xff]
          %v1744 = vld [vmem:[#allocation2 + $0xb8] sm:$0xff]
          %v1745 = vld [vmem:[#allocation2 + $0xc0] sm:$0xff]
          %v1746 = vld [vmem:[#allocation2 + $0xc8] sm:$0xff]
          %v1747 = vld [vmem:[#allocation2 + $0xd0] sm:$0xff]
          %v1748 = vld [vmem:[#allocation2 + $0xd8] sm:$0xff]
          %v1749 = vld [vmem:[#allocation2 + $0xe0] sm:$0xff]
          %v1750 = vld [vmem:[#allocation2 + $0xe8] sm:$0xff]
          %v1751 = vld [vmem:[#allocation2 + $0xf0] sm:$0xff]
          %v1752 = vld [vmem:[#allocation2 + $0xf8] sm:$0xff]
          %1753 = vst.msk [vmem:[%s337] sm:$0xff] %vm1688, %v1721
          %1754 = vst.msk [vmem:[%s337 + $0x8] sm:$0xff] %vm1688, %v1722
          %1755 = vst.msk [vmem:[%s337 + $0x10] sm:$0xff] %vm1688, %v1723
          %1756 = vst.msk [vmem:[%s337 + $0x18] sm:$0xff] %vm1688, %v1724
          %1757 = vst.msk [vmem:[%s337 + $0x20] sm:$0xff] %vm1688, %v1725
          %1758 = vst.msk [vmem:[%s337 + $0x28] sm:$0xff] %vm1688, %v1726
          %1759 = vst.msk [vmem:[%s337 + $0x30] sm:$0xff] %vm1688, %v1727
          %1760 = vst.msk [vmem:[%s337 + $0x38] sm:$0xff] %vm1688, %v1728
          %1761 = vst.msk [vmem:[%s337 + $0x40] sm:$0xff] %vm1688, %v1729
          %1762 = vst.msk [vmem:[%s337 + $0x48] sm:$0xff] %vm1688, %v1730
          %1763 = vst.msk [vmem:[%s337 + $0x50] sm:$0xff] %vm1688, %v1731
          %1764 = vst.msk [vmem:[%s337 + $0x58] sm:$0xff] %vm1688, %v1732
          %1765 = vst.msk [vmem:[%s337 + $0x60] sm:$0xff] %vm1688, %v1733
          %1766 = vst.msk [vmem:[%s337 + $0x68] sm:$0xff] %vm1688, %v1734
          %1767 = vst.msk [vmem:[%s337 + $0x70] sm:$0xff] %vm1688, %v1735
          %1768 = vst.msk [vmem:[%s337 + $0x78] sm:$0xff] %vm1688, %v1736
          %1769 = vst.msk [vmem:[%s337 + $0x80] sm:$0xff] %vm1688, %v1737
          %1770 = vst.msk [vmem:[%s337 + $0x88] sm:$0xff] %vm1688, %v1738
          %1771 = vst.msk [vmem:[%s337 + $0x90] sm:$0xff] %vm1688, %v1739
          %1772 = vst.msk [vmem:[%s337 + $0x98] sm:$0xff] %vm1688, %v1740
          %1773 = vst.msk [vmem:[%s337 + $0xa0] sm:$0xff] %vm1688, %v1741
          %1774 = vst.msk [vmem:[%s337 + $0xa8] sm:$0xff] %vm1688, %v1742
          %1775 = vst.msk [vmem:[%s337 + $0xb0] sm:$0xff] %vm1688, %v1743
          %1776 = vst.msk [vmem:[%s337 + $0xb8] sm:$0xff] %vm1688, %v1744
          %1777 = vst.msk [vmem:[%s337 + $0xc0] sm:$0xff] %vm1688, %v1745
          %1778 = vst.msk [vmem:[%s337 + $0xc8] sm:$0xff] %vm1688, %v1746
          %1779 = vst.msk [vmem:[%s337 + $0xd0] sm:$0xff] %vm1688, %v1747
          %1780 = vst.msk [vmem:[%s337 + $0xd8] sm:$0xff] %vm1688, %v1748
          %1781 = vst.msk [vmem:[%s337 + $0xe0] sm:$0xff] %vm1688, %v1749
          %1782 = vst.msk [vmem:[%s337 + $0xe8] sm:$0xff] %vm1688, %v1750
          %1783 = vst.msk [vmem:[%s337 + $0xf0] sm:$0xff] %vm1688, %v1751
          %1784 = vst.msk [vmem:[%s337 + $0xf8] sm:$0xff] %vm1688, %v1752
        $region60: #{_forward.2} parent=47 // pred_fallthru
          _
        %s1785 = sand.u32 %s196, 1
        %s1786 = sand.u32 %s196, 1
        %s1787 = smul.addr %s1786, 64
        %s1788 = scalar_lea.vmem [#allocation3], %s1787
        %p1789 = scmp.lt.s32.totalorder %s24, 1
        %s1790 = scalar_select %p1789, %s24, 1
        %s1791 = smul.addr %s1790, 32
        %s1792 = smul.addr %s1791, 8
        %s1793 = scalar_lea.vmem %s8, %s1792
        // Predicated region
        $region61: #{_forward.2} parent=47 // pred_check
          %p1794 = pneg %p206
        $region62: #{_forward.2} parent=47 // pred_check_branch
          %1796 = sbr.rel (%p1794) target = $region64
        $region63: #{_forward.2} parent=47 // pred_region
          %s1797 = sadd.s32 %s25, 64
          %s1798 = smul.addr %s24, 80
          %s1799 = sadd.s32 %s1797, %s1798
          %s1800 = smul.addr %s1799, 8
          %s1801 = scalar_lea.vmem %s7, %s1800
          // Predicated region
          $region65: #{_forward.2} parent=63 // pred_check
            _
          $region66: #{_forward.2} parent=63 // pred_check_branch
            %1803 = sbr.rel (0) target = $region68
          $region67: #{_forward.2} parent=63 // pred_region
            // Predicated region
            $region69: #{_forward.2} parent=67 // pred_check
              _
            $region70: #{_forward.2} parent=67 // pred_check_branch
              %1805 = sbr.rel (0) target = $region72
            $region71: #{_forward.2} parent=67 // pred_region
              // Predicated region
              $region84: #{_forward.2} parent=71 // pred_check
                _
              $region85: #{_forward.2} parent=71 // pred_check_branch
                %1835 = sbr.rel (0) target = $region87
              $region86: #{_forward.2} parent=71 // pred_region
                loop: start=0, step=1, limit=1
                $region88: #{_forward.2} parent=86 // loop_pre_header
                  _
                $region89: #{_forward.2} parent=86 // loop_header
                  %s1837 = sphi 0, %s1841
                  %p1838 = scmp.ge.s32.totalorder %s1837, 1
                  %s1842 = sphi %s1788, %s1788
                  %s1843 = sphi %s1801, %s1801
                $region90: #{_forward.2} parent=86 // loop_header_branch
                  %1840 = sbr.rel (%p1838) target = $region94
                $region91: #{_forward.2} parent=86 // loop_body
                  %v1844 = vld [vmem:[%s1842] sm:$0xff]
                  %1845 = vst [vmem:[%s1843] sm:$0xff] %v1844
                  %v1846 = vld [vmem:[%s1842 + $0x8] sm:$0xff]
                  %1847 = vst [vmem:[%s1843 + $0x10] sm:$0xff] %v1846
                  %v1848 = vld [vmem:[%s1842 + $0x10] sm:$0xff]
                  %1849 = vst [vmem:[%s1843 + $0x20] sm:$0xff] %v1848
                  %v1850 = vld [vmem:[%s1842 + $0x18] sm:$0xff]
                  %1851 = vst [vmem:[%s1843 + $0x30] sm:$0xff] %v1850
                  %v1852 = vld [vmem:[%s1842 + $0x20] sm:$0xff]
                  %1853 = vst [vmem:[%s1843 + $0x40] sm:$0xff] %v1852
                  %v1854 = vld [vmem:[%s1842 + $0x28] sm:$0xff]
                  %1855 = vst [vmem:[%s1843 + $0x50] sm:$0xff] %v1854
                  %v1856 = vld [vmem:[%s1842 + $0x30] sm:$0xff]
                  %1857 = vst [vmem:[%s1843 + $0x60] sm:$0xff] %v1856
                  %v1858 = vld [vmem:[%s1842 + $0x38] sm:$0xff]
                  %1859 = vst [vmem:[%s1843 + $0x70] sm:$0xff] %v1858
                $region92: #{_forward.2} parent=86 // loop_footer
                  %s1841 = sadd.s32 1, %s1837
                $region93: #{_forward.2} parent=86 // loop_footer_branch
                  %1836 = sbr.rel target = $region89
                $region94: #{_forward.2} parent=86 // loop_exit
                  _
              $region87: #{_forward.2} parent=71 // pred_fallthru
                _
              // Predicated region
              $region95: #{_forward.2} parent=71 // pred_check
                _
              $region96: #{_forward.2} parent=71 // pred_check_branch
                %1861 = sbr.rel target = $region98
              $region97: #{_forward.2} parent=71 // pred_region
                _
              $region98: #{_forward.2} parent=71 // pred_fallthru
                _
            $region72: #{_forward.2} parent=67 // pred_fallthru
              _
            // Predicated region
            $region73: #{_forward.2} parent=67 // pred_check
              _
            $region74: #{_forward.2} parent=67 // pred_check_branch
              %1807 = sbr.rel target = $region76
            $region75: #{_forward.2} parent=67 // pred_region
              %s1809 = ssub.s32 256, 1
              loop: start=0, step=1, limit=1
              $region77: #{_forward.2} parent=75 // loop_pre_header
                _
              $region78: #{_forward.2} parent=75 // loop_header
                %s1811 = sphi 0, %s1815
                %p1812 = scmp.ge.s32.totalorder %s1811, 1
                %s1816 = sphi %s1788, %s1788
                %s1817 = sphi %s1801, %s1801
              $region79: #{_forward.2} parent=75 // loop_header_branch
                %1814 = sbr.rel (%p1812) target = $region83
              $region80: #{_forward.2} parent=75 // loop_body
                %v1818 = vld [vmem:[%s1816] sm:%s1809]
                %1819 = vst [vmem:[%s1817] sm:%s1809] %v1818
                %v1820 = vld [vmem:[%s1816 + $0x8] sm:%s1809]
                %1821 = vst [vmem:[%s1817 + $0x10] sm:%s1809] %v1820
                %v1822 = vld [vmem:[%s1816 + $0x10] sm:%s1809]
                %1823 = vst [vmem:[%s1817 + $0x20] sm:%s1809] %v1822
                %v1824 = vld [vmem:[%s1816 + $0x18] sm:%s1809]
                %1825 = vst [vmem:[%s1817 + $0x30] sm:%s1809] %v1824
                %v1826 = vld [vmem:[%s1816 + $0x20] sm:%s1809]
                %1827 = vst [vmem:[%s1817 + $0x40] sm:%s1809] %v1826
                %v1828 = vld [vmem:[%s1816 + $0x28] sm:%s1809]
                %1829 = vst [vmem:[%s1817 + $0x50] sm:%s1809] %v1828
                %v1830 = vld [vmem:[%s1816 + $0x30] sm:%s1809]
                %1831 = vst [vmem:[%s1817 + $0x60] sm:%s1809] %v1830
                %v1832 = vld [vmem:[%s1816 + $0x38] sm:%s1809]
                %1833 = vst [vmem:[%s1817 + $0x70] sm:%s1809] %v1832
              $region81: #{_forward.2} parent=75 // loop_footer
                %s1815 = sadd.s32 1, %s1811
              $region82: #{_forward.2} parent=75 // loop_footer_branch
                %1810 = sbr.rel target = $region78
              $region83: #{_forward.2} parent=75 // loop_exit
                _
            $region76: #{_forward.2} parent=67 // pred_fallthru
              _
          $region68: #{_forward.2} parent=63 // pred_fallthru
            _
          %1862 = vnop
        $region64: #{_forward.2} parent=47 // pred_fallthru
          _
        // Predicated region
        $region99: #{_forward.2} parent=47 // pred_check
          %p1863 = pneg %p232
        $region100: #{_forward.2} parent=47 // pred_check_branch
          %1865 = sbr.rel (%p1863) target = $region102
        $region101: #{_forward.2} parent=47 // pred_region
          _
        $region102: #{_forward.2} parent=47 // pred_fallthru
          _
      $region48: #{_forward.2} parent=5 // pred_fallthru
        _
      %p1866 = scmp.le.s32.totalorder 2, %s15
      // Predicated region
      $region103: #{_forward.2} parent=5 // pred_check
        %p1867 = pneg %p1866
      $region104: #{_forward.2} parent=5 // pred_check_branch
        %1869 = sbr.rel (%p1867) target = $region106
      $region105: #{_forward.2} parent=5 // pred_region
        %s1870 = ssub.s32 %s15, 2
        // Predicated region
        $region107: #{_forward.2} parent=105 // pred_check
          %p1871 = pneg %p212
        $region108: #{_forward.2} parent=105 // pred_check_branch
          %1873 = sbr.rel (%p1871) target = $region110
        $region109: #{_forward.2} parent=105 // pred_region
          %s1874 = sand.u32 %s197, 1
          %s1875 = sand.u32 %s197, 1
          %s1876 = smul.addr %s1875, 64
          %s1877 = scalar_lea.vmem [#allocation3], %s1876
        $region110: #{_forward.2} parent=105 // pred_fallthru
          _
        // Predicated region
        $region111: #{_forward.2} parent=105 // pred_check
          %p1878 = pneg %p238
        $region112: #{_forward.2} parent=105 // pred_check_branch
          %1880 = sbr.rel (%p1878) target = $region114
        $region113: #{_forward.2} parent=105 // pred_region
          %p1881 = scmp.lt.s32.totalorder %s26, 1
          %s1882 = scalar_select %p1881, %s26, 1
          %s1883 = smul.addr %s1882, 32
          %s1884 = smul.addr %s1883, 8
          %s1885 = scalar_lea.vmem %s8, %s1884
        $region114: #{_forward.2} parent=105 // pred_fallthru
          _
      $region106: #{_forward.2} parent=5 // pred_fallthru
        _
    $region6: #{_forward.2} parent=1 // loop_footer
      %s19 = sadd.s32 1, %s15
    $region7: #{_forward.2} parent=1 // loop_footer_branch
      %14 = sbr.rel target = $region3
    $region8: #{_forward.2} parent=1 // loop_exit
      _

</llo_original>
